<compile_context>
chip_gen: v6e
topology: v6e:2x2x1
jax: 0.10.0
libtpu: 0.0.40
codegen_flags: <defaults>
</compile_context>

<pallas_src>
import functools
import math

import jax
import jax.numpy as jnp
from jax import lax
from jax.experimental import pallas as pl
from jax.experimental.pallas import tpu as pltpu

_NEG_INF = -1e30  # large-negative mask value (avoids -inf - -inf NaN corner cases)


def _round_up(x, m):
    return ((x + m - 1) // m) * m


def _largest_divisor_leq(n, cap):
    for d in range(min(n, cap), 0, -1):
        if n % d == 0:
            return d
    return 1


# --------------------------------------------------------------------------
# Fused LayerNorm + QKV projection (general path)
#   LN affine (gamma/beta) is folded into the weights in the wrapper, so the
#   kernel only does the mean/var normalize before the bf16 MXU matmul.
# --------------------------------------------------------------------------
def _ln_qkv_kernel(x_ref, w_ref, b_ref, o_ref, *, eps):
    # x_ref: [tm, D] f32; w_ref: [D, tn] bf16 (= diag(gamma) @ W^T, pre-transposed);
    # b_ref: [1, tn] f32 (= b + W @ beta); o_ref: [tm, tn] bf16
    x = x_ref[...].astype(jnp.float32)
    mean = jnp.mean(x, axis=-1, keepdims=True)
    xc = x - mean
    var = jnp.mean(xc * xc, axis=-1, keepdims=True)
    xn = (xc * lax.rsqrt(var + eps)).astype(jnp.bfloat16)
    acc = jnp.dot(xn, w_ref[...], preferred_element_type=jnp.float32)
    o_ref[...] = (acc + b_ref[...].astype(jnp.float32)).astype(o_ref.dtype)


def ln_qkv_projection(x2, gamma, beta, wq, bq, wk, bk, wv, bv, *, eps=1e-5,
                      tm=256, tn=256):
    """x2: [M, D] f32 -> concat(q, k, v): [M, 3D] bf16 (LayerNorm fused in)."""
    M, D = x2.shape
    w_cat = jnp.concatenate([wq, wk, wv], axis=0)                  # [3D, D]
    b_cat = jnp.concatenate([bq, bk, bv], axis=0)                  # [3D]
    # Fold LN affine into the projection:  LN(x) @ W^T + b
    #   = norm(x) @ (diag(gamma) W^T) + (W @ beta + b)
    w_t = (w_cat * gamma[None, :]).T.astype(jnp.bfloat16)          # [D, 3D]
    b_eff = (b_cat + w_cat @ beta).reshape(1, -1).astype(jnp.float32)
    N = 3 * D

    tm = min(tm, _round_up(M, 8))
    tn = min(tn, _round_up(N, 128))
    Mp, Np = _round_up(M, tm), _round_up(N, tn)
    xp = jnp.pad(x2, ((0, Mp - M), (0, 0))) if Mp != M else x2
    wp = jnp.pad(w_t, ((0, 0), (0, Np - N))) if Np != N else w_t
    bp = jnp.pad(b_eff, ((0, 0), (0, Np - N))) if Np != N else b_eff

    out = pl.pallas_call(
        functools.partial(_ln_qkv_kernel, eps=eps),
        out_shape=jax.ShapeDtypeStruct((Mp, Np), jnp.bfloat16),
        grid_spec=pltpu.PrefetchScalarGridSpec(
            num_scalar_prefetch=0,
            grid=(Mp // tm, Np // tn),
            in_specs=[
                pl.BlockSpec((tm, D), lambda i, j: (i, 0)),        # x rows (full D: LN)
                pl.BlockSpec((D, tn), lambda i, j: (0, j)),        # pre-transposed weight
                pl.BlockSpec((1, tn), lambda i, j: (0, j)),        # bias slice
            ],
            out_specs=pl.BlockSpec((tm, tn), lambda i, j: (i, j)),
        ),
        compiler_params=pltpu.CompilerParams(
            dimension_semantics=("parallel", "parallel"),
            vmem_limit_bytes=32 * 1024 * 1024,
        ),
    )(xp, wp, bp)

    if (Mp, Np) != (M, N):
        out = out[:M, :N]
    return out


# --------------------------------------------------------------------------
# Flash-style causal attention, several heads per grid step (general path)
# --------------------------------------------------------------------------
def _flash_attn_kernel(q_ref, k_ref, v_ref, o_ref, m_sc, l_sc, acc_sc, *, scale):
    # q_ref: [Hb, tq, Dh] bf16; k_ref/v_ref: [Hb, tk, Dh] bf16; o_ref: [Hb, tq, Dh] bf16
    qi = pl.program_id(1)
    ki = pl.program_id(2)
    tq = q_ref.shape[1]
    tk = k_ref.shape[1]

    @pl.when(ki == 0)
    def _():
        m_sc[...] = jnp.full_like(m_sc, _NEG_INF)
        l_sc[...] = jnp.zeros_like(l_sc)
        acc_sc[...] = jnp.zeros_like(acc_sc)

    # Skip KV blocks lying entirely above the causal diagonal (~2x on QK^T work).
    @pl.when(ki * tk <= qi * tq + (tq - 1))
    def _():
        s = jnp.einsum("hqd,hkd->hqk", q_ref[...], k_ref[...],
                       preferred_element_type=jnp.float32) * scale
        row = qi * tq + lax.broadcasted_iota(jnp.int32, s.shape, 1)
        col = ki * tk + lax.broadcasted_iota(jnp.int32, s.shape, 2)
        s = jnp.where(col <= row, s, _NEG_INF)
        m_prev = m_sc[...]
        m_new = jnp.maximum(m_prev, jnp.max(s, axis=-1, keepdims=True))
        alpha = jnp.exp(m_prev - m_new)
        p = jnp.exp(s - m_new)
        l_sc[...] = alpha * l_sc[...] + jnp.sum(p, axis=-1, keepdims=True)
        acc_sc[...] = alpha * acc_sc[...] + jnp.einsum(
            "hqk,hkd->hqd", p.astype(jnp.bfloat16), v_ref[...],
            preferred_element_type=jnp.float32)
        m_sc[...] = m_new

    @pl.when(ki == pl.num_programs(2) - 1)
    def _():
        o_ref[...] = (acc_sc[...] * pl.reciprocal(l_sc[...], approx=True)
                      ).astype(o_ref.dtype)


def flash_causal_attention(q, k, v, *, block=128, max_head_batch=8):
    """q, k, v: [BH, S, Dh] bf16 -> causal attention output [BH, S, Dh] bf16."""
    BH, S, Dh = q.shape
    scale = 1.0 / math.sqrt(Dh)
    Hb = _largest_divisor_leq(BH, max_head_batch)
    blk = min(block, _round_up(S, 8))
    Sp = _round_up(S, blk)
    if Sp != S:
        pad = ((0, 0), (0, Sp - S), (0, 0))
        q, k, v = jnp.pad(q, pad), jnp.pad(k, pad), jnp.pad(v, pad)
    nq = Sp // blk
    nk = Sp // blk

    q_spec = pl.BlockSpec((Hb, blk, Dh), lambda b, qi, ki: (b, qi, 0))
    kv_spec = pl.BlockSpec((Hb, blk, Dh), lambda b, qi, ki: (b, ki, 0))
    out = pl.pallas_call(
        functools.partial(_flash_attn_kernel, scale=scale),
        out_shape=jax.ShapeDtypeStruct((BH, Sp, Dh), jnp.bfloat16),
        grid_spec=pltpu.PrefetchScalarGridSpec(
            num_scalar_prefetch=0,
            grid=(BH // Hb, nq, nk),
            in_specs=[q_spec, kv_spec, kv_spec],
            out_specs=pl.BlockSpec((Hb, blk, Dh), lambda b, qi, ki: (b, qi, 0)),
            scratch_shapes=[
                pltpu.VMEM((Hb, blk, 1), jnp.float32),     # running max
                pltpu.VMEM((Hb, blk, 1), jnp.float32),     # running denom
                pltpu.VMEM((Hb, blk, Dh), jnp.float32),    # accumulator
            ],
        ),
        compiler_params=pltpu.CompilerParams(
            dimension_semantics=("parallel", "parallel", "arbitrary"),
            vmem_limit_bytes=32 * 1024 * 1024,
        ),
    )(q, k, v)
    if Sp != S:
        out = out[:, :S, :]
    return out


# --------------------------------------------------------------------------
# Output projection with bias + residual fused into the epilogue (general path)
# --------------------------------------------------------------------------
def _out_proj_residual_kernel(x_ref, w_ref, b_ref, r_ref, o_ref, acc_ref):
    @pl.when(pl.program_id(2) == 0)
    def _():
        acc_ref[...] = jnp.zeros_like(acc_ref)

    acc_ref[...] += jnp.dot(x_ref[...].astype(jnp.bfloat16), w_ref[...],
                            preferred_element_type=jnp.float32)

    @pl.when(pl.program_id(2) == pl.num_programs(2) - 1)
    def _():
        o_ref[...] = (acc_ref[...] + b_ref[...].astype(jnp.float32)
                      + r_ref[...].astype(jnp.float32)).astype(o_ref.dtype)


def out_proj_residual(x2, weight, bias, residual, *, tm=256, tn=256, tk=512):
    """y = x2 @ weight^T + bias + residual.  x2: [M, K], weight: [N, K] (N == D)."""
    M, K = x2.shape
    N = weight.shape[0]
    w_t = weight.T.astype(jnp.bfloat16)                 # pre-transposed once: [K, N]
    b = bias.reshape(1, N).astype(jnp.float32)

    tm = min(tm, _round_up(M, 8))
    tn = min(tn, _round_up(N, 128))
    tk = min(tk, _round_up(K, 128))
    Mp, Np, Kp = _round_up(M, tm), _round_up(N, tn), _round_up(K, tk)

    xp = jnp.pad(x2, ((0, Mp - M), (0, Kp - K))) if (Mp, Kp) != (M, K) else x2
    wp = jnp.pad(w_t, ((0, Kp - K), (0, Np - N))) if (Kp, Np) != (K, N) else w_t
    bp = jnp.pad(b, ((0, 0), (0, Np - N))) if Np != N else b
    rp = (jnp.pad(residual, ((0, Mp - M), (0, Np - N)))
          if (Mp, Np) != (M, N) else residual)

    out = pl.pallas_call(
        _out_proj_residual_kernel,
        out_shape=jax.ShapeDtypeStruct((Mp, Np), residual.dtype),
        grid_spec=pltpu.PrefetchScalarGridSpec(
            num_scalar_prefetch=0,
            grid=(Mp // tm, Np // tn, Kp // tk),
            in_specs=[
                pl.BlockSpec((tm, tk), lambda i, j, k: (i, k)),   # attn tile
                pl.BlockSpec((tk, tn), lambda i, j, k: (k, j)),   # W^T tile
                pl.BlockSpec((1, tn), lambda i, j, k: (0, j)),    # bias slice
                pl.BlockSpec((tm, tn), lambda i, j, k: (i, j)),   # residual tile
            ],
            out_specs=pl.BlockSpec((tm, tn), lambda i, j, k: (i, j)),
            scratch_shapes=[pltpu.VMEM((tm, tn), jnp.float32)],
        ),
        compiler_params=pltpu.CompilerParams(
            dimension_semantics=("parallel", "parallel", "arbitrary"),
            vmem_limit_bytes=32 * 1024 * 1024,
        ),
    )(xp, wp, bp, rp)

    if (Mp, Np) != (M, N):
        out = out[:M, :N]
    return out


# --------------------------------------------------------------------------
# Fully fused single-kernel MHA (small problems: everything resident in VMEM)
# --------------------------------------------------------------------------
def _fused_mha_kernel(x_ref, g_ref, be_ref, wq_ref, bq_ref, wk_ref, bk_ref,
                      wv_ref, bv_ref, wo_ref, bo_ref, o_ref, *,
                      batch, seq_len, num_heads, scale, eps):
    x = x_ref[...].astype(jnp.float32)                       # [B*S, D]
    mean = jnp.mean(x, axis=-1, keepdims=True)
    xc = x - mean
    var = jnp.mean(xc * xc, axis=-1, keepdims=True)
    xn = (xc * lax.rsqrt(var + eps) * g_ref[...].astype(jnp.float32)
          + be_ref[...].astype(jnp.float32)).astype(jnp.bfloat16)

    bo = bo_ref[...].astype(jnp.float32)                     # [1, D]
    S = seq_len
    row = lax.broadcasted_iota(jnp.int32, (S, S), 0)
    col = lax.broadcasted_iota(jnp.int32, (S, S), 1)
    causal = col <= row

    # Per-head projections over all rows (bf16 MXU operands, f32 accumulation).
    heads = []
    for h in range(num_heads):
        q = (jnp.dot(xn, wq_ref[h], preferred_element_type=jnp.float32)
             + bq_ref[h].astype(jnp.float32)).astype(jnp.bfloat16)
        k = (jnp.dot(xn, wk_ref[h], preferred_element_type=jnp.float32)
             + bk_ref[h].astype(jnp.float32)).astype(jnp.bfloat16)
        v = (jnp.dot(xn, wv_ref[h], preferred_element_type=jnp.float32)
             + bv_ref[h].astype(jnp.float32)).astype(jnp.bfloat16)
        heads.append((q, k, v))

    for b in range(batch):
        r0 = b * S
        acc_b = x[r0:r0 + S, :] + bo                         # residual + out-proj bias
        for h in range(num_heads):
            q, k, v = heads[h]
            qb = q[r0:r0 + S, :]
            kb = k[r0:r0 + S, :]
            vb = v[r0:r0 + S, :]
            s = lax.dot_general(qb, kb, (((1,), (1,)), ((), ())),
                                preferred_element_type=jnp.float32) * scale
            s = jnp.where(causal, s, _NEG_INF)
            m = jnp.max(s, axis=-1, keepdims=True)
            p = jnp.exp(s - m)
            l = jnp.sum(p, axis=-1, keepdims=True)
            o_h = jnp.dot(p.astype(jnp.bfloat16), vb,
                          preferred_element_type=jnp.float32)
            o_h = o_h * pl.reciprocal(l, approx=True)
            acc_b = acc_b + jnp.dot(o_h.astype(jnp.bfloat16), wo_ref[h],
                                    preferred_element_type=jnp.float32)
        o_ref[pl.ds(r0, S), :] = acc_b.astype(o_ref.dtype)


def _mha_fused_small(x, params, num_heads, eps):
    B, S, D = x.shape
    H = num_heads
    Dh = D // H
    M = B * S
    x2 = x.reshape(M, D)
    g2 = params["ln_gamma"].reshape(1, D).astype(jnp.float32)
    be2 = params["ln_beta"].reshape(1, D).astype(jnp.float32)

    def per_head_w(w):      # [D, D] (nn.Linear [out, in]) -> [H, D, Dh] pre-transposed
        return jnp.transpose(w.reshape(H, Dh, D), (0, 2, 1)).astype(jnp.bfloat16)

    def per_head_b(b):
        return b.reshape(H, 1, Dh).astype(jnp.float32)

    wq_h, wk_h, wv_h = (per_head_w(params[k]) for k in ("q_w", "k_w", "v_w"))
    bq_h, bk_h, bv_h = (per_head_b(params[k]) for k in ("q_b", "k_b", "v_b"))
    wo_h = params["o_w"].T.reshape(H, Dh, D).astype(jnp.bfloat16)   # rows of Wo^T per head
    bo2 = params["o_b"].reshape(1, D).astype(jnp.float32)

    scale = 1.0 / math.sqrt(Dh)
    out = pl.pallas_call(
        functools.partial(_fused_mha_kernel, batch=B, seq_len=S, num_heads=H,
                          scale=scale, eps=eps),
        out_shape=jax.ShapeDtypeStruct((M, D), x.dtype),
    )(x2, g2, be2, wq_h, bq_h, wk_h, bk_h, wv_h, bv_h, wo_h, bo2)
    return out.reshape(B, S, D)


# --------------------------------------------------------------------------
# General multi-kernel path + dispatcher
# --------------------------------------------------------------------------
def _mha_general(x, params, num_heads, eps):
    B, S, D = x.shape
    H = num_heads
    Dh = D // H
    M = B * S
    x2 = x.reshape(M, D)

    # Fused LayerNorm + QKV projection -> [M, 3D] bf16
    qkv = ln_qkv_projection(
        x2, params["ln_gamma"], params["ln_beta"],
        params["q_w"], params["q_b"], params["k_w"], params["k_b"],
        params["v_w"], params["v_b"], eps=eps)
    q, k, v = jnp.split(qkv, 3, axis=-1)

    # TODO(synk): head split/merge transposes are XLA ops (see header note).
    def to_heads(t):
        return t.reshape(B, S, H, Dh).transpose(0, 2, 1, 3).reshape(B * H, S, Dh)

    attn = flash_causal_attention(to_heads(q), to_heads(k), to_heads(v))
    attn2 = attn.reshape(B, H, S, Dh).transpose(0, 2, 1, 3).reshape(M, D)

    out = out_proj_residual(attn2, params["o_w"], params["o_b"], x2)
    return out.reshape(B, S, D)


def multi_head_attention_forward(x, params, num_heads, *, eps=1e-5, force_path=None):
    """Forward of MultiHeadAttention (attention_mask=None, dropout=0.0 inference)."""
    B, S, D = x.shape
    assert D % num_heads == 0
    if force_path == "fused":
        use_fused = True
    elif force_path == "general":
        use_fused = False
    else:
        # Small problems: one fused kernel kills the launch / transpose / padding
        # overhead that dominates at tiny shapes.
        use_fused = S <= 64 and B * num_heads <= 16 and D <= 512
    if use_fused:
        return _mha_fused_small(x, params, num_heads, eps)
    return _mha_general(x, params, num_heads, eps)


# --------------------------------------------------------------------------
# Pure-JAX reference (same math as the PyTorch module forward)
# --------------------------------------------------------------------------
def mha_reference(x, params, num_heads, eps=1e-5):
    B, S, D = x.shape
    Dh = D // num_heads
    identity = x
    mean = jnp.mean(x, axis=-1, keepdims=True)
    var = jnp.mean((x - mean) ** 2, axis=-1, keepdims=True)
    xn = (x - mean) / jnp.sqrt(var + eps) * params["ln_gamma"] + params["ln_beta"]

    q = xn @ params["q_w"].T + params["q_b"]
    k = xn @ params["k_w"].T + params["k_b"]
    v = xn @ params["v_w"].T + params["v_b"]
    q = q.reshape(B, S, num_heads, Dh).transpose(0, 2, 1, 3)
    k = k.reshape(B, S, num_heads, Dh).transpose(0, 2, 1, 3)
    v = v.reshape(B, S, num_heads, Dh).transpose(0, 2, 1, 3)

    s = jnp.einsum("bhqd,bhkd->bhqk", q, k) / math.sqrt(Dh)
    causal = jnp.triu(jnp.ones((S, S), dtype=bool), k=1)
    s = jnp.where(causal[None, None], -jnp.inf, s)
    p = jax.nn.softmax(s, axis=-1)
    o = jnp.einsum("bhqk,bhkd->bhqd", p, v)
    o = o.transpose(0, 2, 1, 3).reshape(B, S, D)
    out = o @ params["o_w"].T + params["o_b"]
    return identity + out


if __name__ == "__main__":
    def init_params(key, d_model):
        ks = jax.random.split(key, 6)

        def linear_init(k, n, kdim):
            kw, kb = jax.random.split(k)
            bound = 1.0 / math.sqrt(kdim)
            w = jax.random.uniform(kw, (n, kdim), jnp.float32, -bound, bound)
            b = jax.random.uniform(kb, (n,), jnp.float32, -bound, bound)
            return w, b

        q_w, q_b = linear_init(ks[0], d_model, d_model)
        k_w, k_b = linear_init(ks[1], d_model, d_model)
        v_w, v_b = linear_init(ks[2], d_model, d_model)
        o_w, o_b = linear_init(ks[3], d_model, d_model)
        ln_gamma = 1.0 + 0.1 * jax.random.normal(ks[4], (d_model,), jnp.float32)
        ln_beta = 0.05 * jax.random.normal(ks[5], (d_model,), jnp.float32)
        return dict(ln_gamma=ln_gamma, ln_beta=ln_beta,
                    q_w=q_w, q_b=q_b, k_w=k_w, k_b=k_b,
                    v_w=v_w, v_b=v_b, o_w=o_w, o_b=o_b)

    key = jax.random.PRNGKey(0)
    k_p1, k_p2, k_x1, k_x2 = jax.random.split(key, 4)

    # ---- small shape -> fully-fused single-kernel path ----
    batch, seq, d_model, num_heads = 2, 8, 32, 4
    params = init_params(k_p1, d_model)
    x = jax.random.normal(k_x1, (batch, seq, d_model), jnp.float32)
    y = jax.block_until_ready(multi_head_attention_forward(x, params, num_heads))
    y_ref = mha_reference(x, params, num_heads)
    assert y.shape == (batch, seq, d_model)
    err_small = float(jnp.max(jnp.abs(y - y_ref)))
    assert jnp.allclose(y, y_ref, atol=5e-2, rtol=5e-2), err_small

    # ---- larger shape -> general tiled path (LN+QKV, flash attention, out-proj) ----
    batch2, seq2, d_model2, num_heads2 = 2, 256, 256, 4
    params2 = init_params(k_p2, d_model2)
    x_big = jax.random.normal(k_x2, (batch2, seq2, d_model2), jnp.float32)
    y2 = jax.block_until_ready(
        multi_head_attention_forward(x_big, params2, num_heads2, force_path="general"))
    y2_ref = mha_reference(x_big, params2, num_heads2)
    assert y2.shape == (batch2, seq2, d_model2)
    err_big = float(jnp.max(jnp.abs(y2 - y2_ref)))
    assert jnp.allclose(y2, y2_ref, atol=1e-1, rtol=1e-1), err_big

    print("KERNEL_OK")
</pallas_src>

<mosaic_0001>
module attributes {stable_mosaic.version = 11 : i64} {
  func.func @_fused_mha_kernel(%arg0: memref<16x32xf32, #tpu.memory_space<vmem>>, %arg1: memref<1x32xf32, #tpu.memory_space<vmem>>, %arg2: memref<1x32xf32, #tpu.memory_space<vmem>>, %arg3: memref<4x32x8xbf16, #tpu.memory_space<vmem>>, %arg4: memref<4x1x8xf32, #tpu.memory_space<vmem>>, %arg5: memref<4x32x8xbf16, #tpu.memory_space<vmem>>, %arg6: memref<4x1x8xf32, #tpu.memory_space<vmem>>, %arg7: memref<4x32x8xbf16, #tpu.memory_space<vmem>>, %arg8: memref<4x1x8xf32, #tpu.memory_space<vmem>>, %arg9: memref<4x8x32xbf16, #tpu.memory_space<vmem>>, %arg10: memref<1x32xf32, #tpu.memory_space<vmem>>, %arg11: memref<16x32xf32, #tpu.memory_space<vmem>>) attributes {dimension_semantics = [], scalar_prefetch = 0 : i64, scratch_operands = 0 : i64, tpu.core_type = #tpu.core_type<tc>} {
    %c0 = arith.constant 0 : index
    %c0_0 = arith.constant 0 : index
    %0 = vector.load %arg0[%c0, %c0_0] : memref<16x32xf32, #tpu.memory_space<vmem>>, vector<16x32xf32>
    %cst = arith.constant dense<0.000000e+00> : vector<16xf32>
    %1 = vector.multi_reduction <add>, %0, %cst [1] : vector<16x32xf32> to vector<16xf32>
    %2 = vector.shape_cast %1 : vector<16xf32> to vector<16x1xf32>
    %cst_1 = arith.constant 3.200000e+01 : f32
    %3 = vector.broadcast %cst_1 : f32 to vector<16x1xf32>
    %4 = arith.divf %2, %3 : vector<16x1xf32>
    %5 = vector.broadcast %4 : vector<16x1xf32> to vector<16x32xf32>
    %6 = arith.subf %0, %5 : vector<16x32xf32>
    %7 = arith.mulf %6, %6 : vector<16x32xf32>
    %cst_2 = arith.constant dense<0.000000e+00> : vector<16xf32>
    %8 = vector.multi_reduction <add>, %7, %cst_2 [1] : vector<16x32xf32> to vector<16xf32>
    %9 = vector.shape_cast %8 : vector<16xf32> to vector<16x1xf32>
    %cst_3 = arith.constant 3.200000e+01 : f32
    %10 = vector.broadcast %cst_3 : f32 to vector<16x1xf32>
    %11 = arith.divf %9, %10 : vector<16x1xf32>
    %cst_4 = arith.constant 9.99999974E-6 : f32
    %12 = vector.broadcast %cst_4 : f32 to vector<16x1xf32>
    %13 = arith.addf %11, %12 : vector<16x1xf32>
    %14 = math.rsqrt %13 : vector<16x1xf32>
    %15 = vector.broadcast %14 : vector<16x1xf32> to vector<16x32xf32>
    %16 = arith.mulf %6, %15 : vector<16x32xf32>
    %c0_5 = arith.constant 0 : index
    %c0_6 = arith.constant 0 : index
    %17 = vector.load %arg1[%c0_5, %c0_6] : memref<1x32xf32, #tpu.memory_space<vmem>>, vector<1x32xf32>
    %18 = vector.broadcast %17 : vector<1x32xf32> to vector<16x32xf32>
    %19 = arith.mulf %16, %18 : vector<16x32xf32>
    %c0_7 = arith.constant 0 : index
    %c0_8 = arith.constant 0 : index
    %20 = vector.load %arg2[%c0_7, %c0_8] : memref<1x32xf32, #tpu.memory_space<vmem>>, vector<1x32xf32>
    %21 = vector.broadcast %20 : vector<1x32xf32> to vector<16x32xf32>
    %22 = arith.addf %19, %21 : vector<16x32xf32>
    %23 = arith.truncf %22 : vector<16x32xf32> to vector<16x32xbf16>
    %c0_9 = arith.constant 0 : index
    %c0_10 = arith.constant 0 : index
    %24 = vector.load %arg10[%c0_9, %c0_10] : memref<1x32xf32, #tpu.memory_space<vmem>>, vector<1x32xf32>
    %25 = tpu.iota {dimensions = array<i32: 0>} : vector<8x8xi32>
    %26 = tpu.iota {dimensions = array<i32: 1>} : vector<8x8xi32>
    %27 = arith.cmpi sle, %26, %25 : vector<8x8xi32>
    %c0_11 = arith.constant 0 : index
    %c0_12 = arith.constant 0 : index
    %c0_13 = arith.constant 0 : index
    %28 = vector.load %arg3[%c0_11, %c0_12, %c0_13] : memref<4x32x8xbf16, #tpu.memory_space<vmem>>, vector<1x32x8xbf16>
    %29 = vector.shape_cast %28 : vector<1x32x8xbf16> to vector<32x8xbf16>
    %cst_14 = arith.constant dense<0.000000e+00> : vector<16x8xf32>
    %30 = tpu.matmul %23, %29, %cst_14 {dimension_numbers = #tpu.dot_dimension_numbers<[1], [0], [0], [1], [0, 0, 1, 1], [], []>} : vector<16x32xbf16>, vector<32x8xbf16>, vector<16x8xf32> -> vector<16x8xf32>
    %c0_15 = arith.constant 0 : index
    %c0_16 = arith.constant 0 : index
    %c0_17 = arith.constant 0 : index
    %31 = vector.load %arg4[%c0_15, %c0_16, %c0_17] : memref<4x1x8xf32, #tpu.memory_space<vmem>>, vector<1x1x8xf32>
    %32 = vector.shape_cast %31 : vector<1x1x8xf32> to vector<1x8xf32>
    %33 = vector.broadcast %32 : vector<1x8xf32> to vector<16x8xf32>
    %34 = arith.addf %30, %33 : vector<16x8xf32>
    %35 = arith.truncf %34 : vector<16x8xf32> to vector<16x8xbf16>
    %c0_18 = arith.constant 0 : index
    %c0_19 = arith.constant 0 : index
    %c0_20 = arith.constant 0 : index
    %36 = vector.load %arg5[%c0_18, %c0_19, %c0_20] : memref<4x32x8xbf16, #tpu.memory_space<vmem>>, vector<1x32x8xbf16>
    %37 = vector.shape_cast %36 : vector<1x32x8xbf16> to vector<32x8xbf16>
    %cst_21 = arith.constant dense<0.000000e+00> : vector<16x8xf32>
    %38 = tpu.matmul %23, %37, %cst_21 {dimension_numbers = #tpu.dot_dimension_numbers<[1], [0], [0], [1], [0, 0, 1, 1], [], []>} : vector<16x32xbf16>, vector<32x8xbf16>, vector<16x8xf32> -> vector<16x8xf32>
    %c0_22 = arith.constant 0 : index
    %c0_23 = arith.constant 0 : index
    %c0_24 = arith.constant 0 : index
    %39 = vector.load %arg6[%c0_22, %c0_23, %c0_24] : memref<4x1x8xf32, #tpu.memory_space<vmem>>, vector<1x1x8xf32>
    %40 = vector.shape_cast %39 : vector<1x1x8xf32> to vector<1x8xf32>
    %41 = vector.broadcast %40 : vector<1x8xf32> to vector<16x8xf32>
    %42 = arith.addf %38, %41 : vector<16x8xf32>
    %43 = arith.truncf %42 : vector<16x8xf32> to vector<16x8xbf16>
    %c0_25 = arith.constant 0 : index
    %c0_26 = arith.constant 0 : index
    %c0_27 = arith.constant 0 : index
    %44 = vector.load %arg7[%c0_25, %c0_26, %c0_27] : memref<4x32x8xbf16, #tpu.memory_space<vmem>>, vector<1x32x8xbf16>
    %45 = vector.shape_cast %44 : vector<1x32x8xbf16> to vector<32x8xbf16>
    %cst_28 = arith.constant dense<0.000000e+00> : vector<16x8xf32>
    %46 = tpu.matmul %23, %45, %cst_28 {dimension_numbers = #tpu.dot_dimension_numbers<[1], [0], [0], [1], [0, 0, 1, 1], [], []>} : vector<16x32xbf16>, vector<32x8xbf16>, vector<16x8xf32> -> vector<16x8xf32>
    %c0_29 = arith.constant 0 : index
    %c0_30 = arith.constant 0 : index
    %c0_31 = arith.constant 0 : index
    %47 = vector.load %arg8[%c0_29, %c0_30, %c0_31] : memref<4x1x8xf32, #tpu.memory_space<vmem>>, vector<1x1x8xf32>
    %48 = vector.shape_cast %47 : vector<1x1x8xf32> to vector<1x8xf32>
    %49 = vector.broadcast %48 : vector<1x8xf32> to vector<16x8xf32>
    %50 = arith.addf %46, %49 : vector<16x8xf32>
    %51 = arith.truncf %50 : vector<16x8xf32> to vector<16x8xbf16>
    %c1 = arith.constant 1 : index
    %c0_32 = arith.constant 0 : index
    %c0_33 = arith.constant 0 : index
    %52 = vector.load %arg3[%c1, %c0_32, %c0_33] : memref<4x32x8xbf16, #tpu.memory_space<vmem>>, vector<1x32x8xbf16>
    %53 = vector.shape_cast %52 : vector<1x32x8xbf16> to vector<32x8xbf16>
    %cst_34 = arith.constant dense<0.000000e+00> : vector<16x8xf32>
    %54 = tpu.matmul %23, %53, %cst_34 {dimension_numbers = #tpu.dot_dimension_numbers<[1], [0], [0], [1], [0, 0, 1, 1], [], []>} : vector<16x32xbf16>, vector<32x8xbf16>, vector<16x8xf32> -> vector<16x8xf32>
    %c1_35 = arith.constant 1 : index
    %c0_36 = arith.constant 0 : index
    %c0_37 = arith.constant 0 : index
    %55 = vector.load %arg4[%c1_35, %c0_36, %c0_37] : memref<4x1x8xf32, #tpu.memory_space<vmem>>, vector<1x1x8xf32>
    %56 = vector.shape_cast %55 : vector<1x1x8xf32> to vector<1x8xf32>
    %57 = vector.broadcast %56 : vector<1x8xf32> to vector<16x8xf32>
    %58 = arith.addf %54, %57 : vector<16x8xf32>
    %59 = arith.truncf %58 : vector<16x8xf32> to vector<16x8xbf16>
    %c1_38 = arith.constant 1 : index
    %c0_39 = arith.constant 0 : index
    %c0_40 = arith.constant 0 : index
    %60 = vector.load %arg5[%c1_38, %c0_39, %c0_40] : memref<4x32x8xbf16, #tpu.memory_space<vmem>>, vector<1x32x8xbf16>
    %61 = vector.shape_cast %60 : vector<1x32x8xbf16> to vector<32x8xbf16>
    %cst_41 = arith.constant dense<0.000000e+00> : vector<16x8xf32>
    %62 = tpu.matmul %23, %61, %cst_41 {dimension_numbers = #tpu.dot_dimension_numbers<[1], [0], [0], [1], [0, 0, 1, 1], [], []>} : vector<16x32xbf16>, vector<32x8xbf16>, vector<16x8xf32> -> vector<16x8xf32>
    %c1_42 = arith.constant 1 : index
    %c0_43 = arith.constant 0 : index
    %c0_44 = arith.constant 0 : index
    %63 = vector.load %arg6[%c1_42, %c0_43, %c0_44] : memref<4x1x8xf32, #tpu.memory_space<vmem>>, vector<1x1x8xf32>
    %64 = vector.shape_cast %63 : vector<1x1x8xf32> to vector<1x8xf32>
    %65 = vector.broadcast %64 : vector<1x8xf32> to vector<16x8xf32>
    %66 = arith.addf %62, %65 : vector<16x8xf32>
    %67 = arith.truncf %66 : vector<16x8xf32> to vector<16x8xbf16>
    %c1_45 = arith.constant 1 : index
    %c0_46 = arith.constant 0 : index
    %c0_47 = arith.constant 0 : index
    %68 = vector.load %arg7[%c1_45, %c0_46, %c0_47] : memref<4x32x8xbf16, #tpu.memory_space<vmem>>, vector<1x32x8xbf16>
    %69 = vector.shape_cast %68 : vector<1x32x8xbf16> to vector<32x8xbf16>
    %cst_48 = arith.constant dense<0.000000e+00> : vector<16x8xf32>
    %70 = tpu.matmul %23, %69, %cst_48 {dimension_numbers = #tpu.dot_dimension_numbers<[1], [0], [0], [1], [0, 0, 1, 1], [], []>} : vector<16x32xbf16>, vector<32x8xbf16>, vector<16x8xf32> -> vector<16x8xf32>
    %c1_49 = arith.constant 1 : index
    %c0_50 = arith.constant 0 : index
    %c0_51 = arith.constant 0 : index
    %71 = vector.load %arg8[%c1_49, %c0_50, %c0_51] : memref<4x1x8xf32, #tpu.memory_space<vmem>>, vector<1x1x8xf32>
    %72 = vector.shape_cast %71 : vector<1x1x8xf32> to vector<1x8xf32>
    %73 = vector.broadcast %72 : vector<1x8xf32> to vector<16x8xf32>
    %74 = arith.addf %70, %73 : vector<16x8xf32>
    %75 = arith.truncf %74 : vector<16x8xf32> to vector<16x8xbf16>
    %c2 = arith.constant 2 : index
    %c0_52 = arith.constant 0 : index
    %c0_53 = arith.constant 0 : index
    %76 = vector.load %arg3[%c2, %c0_52, %c0_53] : memref<4x32x8xbf16, #tpu.memory_space<vmem>>, vector<1x32x8xbf16>
    %77 = vector.shape_cast %76 : vector<1x32x8xbf16> to vector<32x8xbf16>
    %cst_54 = arith.constant dense<0.000000e+00> : vector<16x8xf32>
    %78 = tpu.matmul %23, %77, %cst_54 {dimension_numbers = #tpu.dot_dimension_numbers<[1], [0], [0], [1], [0, 0, 1, 1], [], []>} : vector<16x32xbf16>, vector<32x8xbf16>, vector<16x8xf32> -> vector<16x8xf32>
    %c2_55 = arith.constant 2 : index
    %c0_56 = arith.constant 0 : index
    %c0_57 = arith.constant 0 : index
    %79 = vector.load %arg4[%c2_55, %c0_56, %c0_57] : memref<4x1x8xf32, #tpu.memory_space<vmem>>, vector<1x1x8xf32>
    %80 = vector.shape_cast %79 : vector<1x1x8xf32> to vector<1x8xf32>
    %81 = vector.broadcast %80 : vector<1x8xf32> to vector<16x8xf32>
    %82 = arith.addf %78, %81 : vector<16x8xf32>
    %83 = arith.truncf %82 : vector<16x8xf32> to vector<16x8xbf16>
    %c2_58 = arith.constant 2 : index
    %c0_59 = arith.constant 0 : index
    %c0_60 = arith.constant 0 : index
    %84 = vector.load %arg5[%c2_58, %c0_59, %c0_60] : memref<4x32x8xbf16, #tpu.memory_space<vmem>>, vector<1x32x8xbf16>
    %85 = vector.shape_cast %84 : vector<1x32x8xbf16> to vector<32x8xbf16>
    %cst_61 = arith.constant dense<0.000000e+00> : vector<16x8xf32>
    %86 = tpu.matmul %23, %85, %cst_61 {dimension_numbers = #tpu.dot_dimension_numbers<[1], [0], [0], [1], [0, 0, 1, 1], [], []>} : vector<16x32xbf16>, vector<32x8xbf16>, vector<16x8xf32> -> vector<16x8xf32>
    %c2_62 = arith.constant 2 : index
    %c0_63 = arith.constant 0 : index
    %c0_64 = arith.constant 0 : index
    %87 = vector.load %arg6[%c2_62, %c0_63, %c0_64] : memref<4x1x8xf32, #tpu.memory_space<vmem>>, vector<1x1x8xf32>
    %88 = vector.shape_cast %87 : vector<1x1x8xf32> to vector<1x8xf32>
    %89 = vector.broadcast %88 : vector<1x8xf32> to vector<16x8xf32>
    %90 = arith.addf %86, %89 : vector<16x8xf32>
    %91 = arith.truncf %90 : vector<16x8xf32> to vector<16x8xbf16>
    %c2_65 = arith.constant 2 : index
    %c0_66 = arith.constant 0 : index
    %c0_67 = arith.constant 0 : index
    %92 = vector.load %arg7[%c2_65, %c0_66, %c0_67] : memref<4x32x8xbf16, #tpu.memory_space<vmem>>, vector<1x32x8xbf16>
    %93 = vector.shape_cast %92 : vector<1x32x8xbf16> to vector<32x8xbf16>
    %cst_68 = arith.constant dense<0.000000e+00> : vector<16x8xf32>
    %94 = tpu.matmul %23, %93, %cst_68 {dimension_numbers = #tpu.dot_dimension_numbers<[1], [0], [0], [1], [0, 0, 1, 1], [], []>} : vector<16x32xbf16>, vector<32x8xbf16>, vector<16x8xf32> -> vector<16x8xf32>
    %c2_69 = arith.constant 2 : index
    %c0_70 = arith.constant 0 : index
    %c0_71 = arith.constant 0 : index
    %95 = vector.load %arg8[%c2_69, %c0_70, %c0_71] : memref<4x1x8xf32, #tpu.memory_space<vmem>>, vector<1x1x8xf32>
    %96 = vector.shape_cast %95 : vector<1x1x8xf32> to vector<1x8xf32>
    %97 = vector.broadcast %96 : vector<1x8xf32> to vector<16x8xf32>
    %98 = arith.addf %94, %97 : vector<16x8xf32>
    %99 = arith.truncf %98 : vector<16x8xf32> to vector<16x8xbf16>
    %c3 = arith.constant 3 : index
    %c0_72 = arith.constant 0 : index
    %c0_73 = arith.constant 0 : index
    %100 = vector.load %arg3[%c3, %c0_72, %c0_73] : memref<4x32x8xbf16, #tpu.memory_space<vmem>>, vector<1x32x8xbf16>
    %101 = vector.shape_cast %100 : vector<1x32x8xbf16> to vector<32x8xbf16>
    %cst_74 = arith.constant dense<0.000000e+00> : vector<16x8xf32>
    %102 = tpu.matmul %23, %101, %cst_74 {dimension_numbers = #tpu.dot_dimension_numbers<[1], [0], [0], [1], [0, 0, 1, 1], [], []>} : vector<16x32xbf16>, vector<32x8xbf16>, vector<16x8xf32> -> vector<16x8xf32>
    %c3_75 = arith.constant 3 : index
    %c0_76 = arith.constant 0 : index
    %c0_77 = arith.constant 0 : index
    %103 = vector.load %arg4[%c3_75, %c0_76, %c0_77] : memref<4x1x8xf32, #tpu.memory_space<vmem>>, vector<1x1x8xf32>
    %104 = vector.shape_cast %103 : vector<1x1x8xf32> to vector<1x8xf32>
    %105 = vector.broadcast %104 : vector<1x8xf32> to vector<16x8xf32>
    %106 = arith.addf %102, %105 : vector<16x8xf32>
    %107 = arith.truncf %106 : vector<16x8xf32> to vector<16x8xbf16>
    %c3_78 = arith.constant 3 : index
    %c0_79 = arith.constant 0 : index
    %c0_80 = arith.constant 0 : index
    %108 = vector.load %arg5[%c3_78, %c0_79, %c0_80] : memref<4x32x8xbf16, #tpu.memory_space<vmem>>, vector<1x32x8xbf16>
    %109 = vector.shape_cast %108 : vector<1x32x8xbf16> to vector<32x8xbf16>
    %cst_81 = arith.constant dense<0.000000e+00> : vector<16x8xf32>
    %110 = tpu.matmul %23, %109, %cst_81 {dimension_numbers = #tpu.dot_dimension_numbers<[1], [0], [0], [1], [0, 0, 1, 1], [], []>} : vector<16x32xbf16>, vector<32x8xbf16>, vector<16x8xf32> -> vector<16x8xf32>
    %c3_82 = arith.constant 3 : index
    %c0_83 = arith.constant 0 : index
    %c0_84 = arith.constant 0 : index
    %111 = vector.load %arg6[%c3_82, %c0_83, %c0_84] : memref<4x1x8xf32, #tpu.memory_space<vmem>>, vector<1x1x8xf32>
    %112 = vector.shape_cast %111 : vector<1x1x8xf32> to vector<1x8xf32>
    %113 = vector.broadcast %112 : vector<1x8xf32> to vector<16x8xf32>
    %114 = arith.addf %110, %113 : vector<16x8xf32>
    %115 = arith.truncf %114 : vector<16x8xf32> to vector<16x8xbf16>
    %c3_85 = arith.constant 3 : index
    %c0_86 = arith.constant 0 : index
    %c0_87 = arith.constant 0 : index
    %116 = vector.load %arg7[%c3_85, %c0_86, %c0_87] : memref<4x32x8xbf16, #tpu.memory_space<vmem>>, vector<1x32x8xbf16>
    %117 = vector.shape_cast %116 : vector<1x32x8xbf16> to vector<32x8xbf16>
    %cst_88 = arith.constant dense<0.000000e+00> : vector<16x8xf32>
    %118 = tpu.matmul %23, %117, %cst_88 {dimension_numbers = #tpu.dot_dimension_numbers<[1], [0], [0], [1], [0, 0, 1, 1], [], []>} : vector<16x32xbf16>, vector<32x8xbf16>, vector<16x8xf32> -> vector<16x8xf32>
    %c3_89 = arith.constant 3 : index
    %c0_90 = arith.constant 0 : index
    %c0_91 = arith.constant 0 : index
    %119 = vector.load %arg8[%c3_89, %c0_90, %c0_91] : memref<4x1x8xf32, #tpu.memory_space<vmem>>, vector<1x1x8xf32>
    %120 = vector.shape_cast %119 : vector<1x1x8xf32> to vector<1x8xf32>
    %121 = vector.broadcast %120 : vector<1x8xf32> to vector<16x8xf32>
    %122 = arith.addf %118, %121 : vector<16x8xf32>
    %123 = arith.truncf %122 : vector<16x8xf32> to vector<16x8xbf16>
    %124 = vector.extract_strided_slice %0 {offsets = [0, 0], sizes = [8, 32], strides = [1, 1]} : vector<16x32xf32> to vector<8x32xf32>
    %125 = vector.broadcast %24 : vector<1x32xf32> to vector<8x32xf32>
    %126 = arith.addf %124, %125 : vector<8x32xf32>
    %127 = vector.extract_strided_slice %35 {offsets = [0, 0], sizes = [8, 8], strides = [1, 1]} : vector<16x8xbf16> to vector<8x8xbf16>
    %128 = vector.extract_strided_slice %43 {offsets = [0, 0], sizes = [8, 8], strides = [1, 1]} : vector<16x8xbf16> to vector<8x8xbf16>
    %129 = vector.extract_strided_slice %51 {offsets = [0, 0], sizes = [8, 8], strides = [1, 1]} : vector<16x8xbf16> to vector<8x8xbf16>
    %cst_92 = arith.constant dense<0.000000e+00> : vector<8x8xf32>
    %130 = tpu.matmul %127, %128, %cst_92 {dimension_numbers = #tpu.dot_dimension_numbers<[1], [1], [0], [0], [0, 0, 1, 0], [], []>} : vector<8x8xbf16>, vector<8x8xbf16>, vector<8x8xf32> -> vector<8x8xf32>
    %cst_93 = arith.constant 0.353553385 : f32
    %131 = vector.broadcast %cst_93 : f32 to vector<8x8xf32>
    %132 = arith.mulf %130, %131 : vector<8x8xf32>
    %cst_94 = arith.constant -1.000000e+30 : f32
    %133 = vector.broadcast %cst_94 : f32 to vector<8x8xf32>
    %134 = arith.select %27, %132, %133 : vector<8x8xi1>, vector<8x8xf32>
    %cst_95 = arith.constant dense<0xFF800000> : vector<8xf32>
    %135 = vector.multi_reduction <maximumf>, %134, %cst_95 [1] : vector<8x8xf32> to vector<8xf32>
    %136 = vector.shape_cast %135 : vector<8xf32> to vector<8x1xf32>
    %137 = vector.broadcast %136 : vector<8x1xf32> to vector<8x8xf32>
    %138 = arith.subf %134, %137 : vector<8x8xf32>
    %139 = math.exp %138 : vector<8x8xf32>
    %cst_96 = arith.constant dense<0.000000e+00> : vector<8xf32>
    %140 = vector.multi_reduction <add>, %139, %cst_96 [1] : vector<8x8xf32> to vector<8xf32>
    %141 = vector.shape_cast %140 : vector<8xf32> to vector<8x1xf32>
    %142 = arith.truncf %139 : vector<8x8xf32> to vector<8x8xbf16>
    %cst_97 = arith.constant dense<0.000000e+00> : vector<8x8xf32>
    %143 = tpu.matmul %142, %129, %cst_97 {dimension_numbers = #tpu.dot_dimension_numbers<[1], [0], [0], [1], [0, 0, 1, 1], [], []>} : vector<8x8xbf16>, vector<8x8xbf16>, vector<8x8xf32> -> vector<8x8xf32>
    %144 = tpu.reciprocal %141 {approx = true} : vector<8x1xf32> -> vector<8x1xf32>
    %145 = vector.broadcast %144 : vector<8x1xf32> to vector<8x8xf32>
    %146 = arith.mulf %143, %145 : vector<8x8xf32>
    %147 = arith.truncf %146 : vector<8x8xf32> to vector<8x8xbf16>
    %c0_98 = arith.constant 0 : index
    %c0_99 = arith.constant 0 : index
    %c0_100 = arith.constant 0 : index
    %148 = vector.load %arg9[%c0_98, %c0_99, %c0_100] : memref<4x8x32xbf16, #tpu.memory_space<vmem>>, vector<1x8x32xbf16>
    %149 = vector.shape_cast %148 : vector<1x8x32xbf16> to vector<8x32xbf16>
    %cst_101 = arith.constant dense<0.000000e+00> : vector<8x32xf32>
    %150 = tpu.matmul %147, %149, %cst_101 {dimension_numbers = #tpu.dot_dimension_numbers<[1], [0], [0], [1], [0, 0, 1, 1], [], []>} : vector<8x8xbf16>, vector<8x32xbf16>, vector<8x32xf32> -> vector<8x32xf32>
    %151 = arith.addf %126, %150 : vector<8x32xf32>
    %152 = vector.extract_strided_slice %59 {offsets = [0, 0], sizes = [8, 8], strides = [1, 1]} : vector<16x8xbf16> to vector<8x8xbf16>
    %153 = vector.extract_strided_slice %67 {offsets = [0, 0], sizes = [8, 8], strides = [1, 1]} : vector<16x8xbf16> to vector<8x8xbf16>
    %154 = vector.extract_strided_slice %75 {offsets = [0, 0], sizes = [8, 8], strides = [1, 1]} : vector<16x8xbf16> to vector<8x8xbf16>
    %cst_102 = arith.constant dense<0.000000e+00> : vector<8x8xf32>
    %155 = tpu.matmul %152, %153, %cst_102 {dimension_numbers = #tpu.dot_dimension_numbers<[1], [1], [0], [0], [0, 0, 1, 0], [], []>} : vector<8x8xbf16>, vector<8x8xbf16>, vector<8x8xf32> -> vector<8x8xf32>
    %cst_103 = arith.constant 0.353553385 : f32
    %156 = vector.broadcast %cst_103 : f32 to vector<8x8xf32>
    %157 = arith.mulf %155, %156 : vector<8x8xf32>
    %cst_104 = arith.constant -1.000000e+30 : f32
    %158 = vector.broadcast %cst_104 : f32 to vector<8x8xf32>
    %159 = arith.select %27, %157, %158 : vector<8x8xi1>, vector<8x8xf32>
    %cst_105 = arith.constant dense<0xFF800000> : vector<8xf32>
    %160 = vector.multi_reduction <maximumf>, %159, %cst_105 [1] : vector<8x8xf32> to vector<8xf32>
    %161 = vector.shape_cast %160 : vector<8xf32> to vector<8x1xf32>
    %162 = vector.broadcast %161 : vector<8x1xf32> to vector<8x8xf32>
    %163 = arith.subf %159, %162 : vector<8x8xf32>
    %164 = math.exp %163 : vector<8x8xf32>
    %cst_106 = arith.constant dense<0.000000e+00> : vector<8xf32>
    %165 = vector.multi_reduction <add>, %164, %cst_106 [1] : vector<8x8xf32> to vector<8xf32>
    %166 = vector.shape_cast %165 : vector<8xf32> to vector<8x1xf32>
    %167 = arith.truncf %164 : vector<8x8xf32> to vector<8x8xbf16>
    %cst_107 = arith.constant dense<0.000000e+00> : vector<8x8xf32>
    %168 = tpu.matmul %167, %154, %cst_107 {dimension_numbers = #tpu.dot_dimension_numbers<[1], [0], [0], [1], [0, 0, 1, 1], [], []>} : vector<8x8xbf16>, vector<8x8xbf16>, vector<8x8xf32> -> vector<8x8xf32>
    %169 = tpu.reciprocal %166 {approx = true} : vector<8x1xf32> -> vector<8x1xf32>
    %170 = vector.broadcast %169 : vector<8x1xf32> to vector<8x8xf32>
    %171 = arith.mulf %168, %170 : vector<8x8xf32>
    %172 = arith.truncf %171 : vector<8x8xf32> to vector<8x8xbf16>
    %c1_108 = arith.constant 1 : index
    %c0_109 = arith.constant 0 : index
    %c0_110 = arith.constant 0 : index
    %173 = vector.load %arg9[%c1_108, %c0_109, %c0_110] : memref<4x8x32xbf16, #tpu.memory_space<vmem>>, vector<1x8x32xbf16>
    %174 = vector.shape_cast %173 : vector<1x8x32xbf16> to vector<8x32xbf16>
    %cst_111 = arith.constant dense<0.000000e+00> : vector<8x32xf32>
    %175 = tpu.matmul %172, %174, %cst_111 {dimension_numbers = #tpu.dot_dimension_numbers<[1], [0], [0], [1], [0, 0, 1, 1], [], []>} : vector<8x8xbf16>, vector<8x32xbf16>, vector<8x32xf32> -> vector<8x32xf32>
    %176 = arith.addf %151, %175 : vector<8x32xf32>
    %177 = vector.extract_strided_slice %83 {offsets = [0, 0], sizes = [8, 8], strides = [1, 1]} : vector<16x8xbf16> to vector<8x8xbf16>
    %178 = vector.extract_strided_slice %91 {offsets = [0, 0], sizes = [8, 8], strides = [1, 1]} : vector<16x8xbf16> to vector<8x8xbf16>
    %179 = vector.extract_strided_slice %99 {offsets = [0, 0], sizes = [8, 8], strides = [1, 1]} : vector<16x8xbf16> to vector<8x8xbf16>
    %cst_112 = arith.constant dense<0.000000e+00> : vector<8x8xf32>
    %180 = tpu.matmul %177, %178, %cst_112 {dimension_numbers = #tpu.dot_dimension_numbers<[1], [1], [0], [0], [0, 0, 1, 0], [], []>} : vector<8x8xbf16>, vector<8x8xbf16>, vector<8x8xf32> -> vector<8x8xf32>
    %cst_113 = arith.constant 0.353553385 : f32
    %181 = vector.broadcast %cst_113 : f32 to vector<8x8xf32>
    %182 = arith.mulf %180, %181 : vector<8x8xf32>
    %cst_114 = arith.constant -1.000000e+30 : f32
    %183 = vector.broadcast %cst_114 : f32 to vector<8x8xf32>
    %184 = arith.select %27, %182, %183 : vector<8x8xi1>, vector<8x8xf32>
    %cst_115 = arith.constant dense<0xFF800000> : vector<8xf32>
    %185 = vector.multi_reduction <maximumf>, %184, %cst_115 [1] : vector<8x8xf32> to vector<8xf32>
    %186 = vector.shape_cast %185 : vector<8xf32> to vector<8x1xf32>
    %187 = vector.broadcast %186 : vector<8x1xf32> to vector<8x8xf32>
    %188 = arith.subf %184, %187 : vector<8x8xf32>
    %189 = math.exp %188 : vector<8x8xf32>
    %cst_116 = arith.constant dense<0.000000e+00> : vector<8xf32>
    %190 = vector.multi_reduction <add>, %189, %cst_116 [1] : vector<8x8xf32> to vector<8xf32>
    %191 = vector.shape_cast %190 : vector<8xf32> to vector<8x1xf32>
    %192 = arith.truncf %189 : vector<8x8xf32> to vector<8x8xbf16>
    %cst_117 = arith.constant dense<0.000000e+00> : vector<8x8xf32>
    %193 = tpu.matmul %192, %179, %cst_117 {dimension_numbers = #tpu.dot_dimension_numbers<[1], [0], [0], [1], [0, 0, 1, 1], [], []>} : vector<8x8xbf16>, vector<8x8xbf16>, vector<8x8xf32> -> vector<8x8xf32>
    %194 = tpu.reciprocal %191 {approx = true} : vector<8x1xf32> -> vector<8x1xf32>
    %195 = vector.broadcast %194 : vector<8x1xf32> to vector<8x8xf32>
    %196 = arith.mulf %193, %195 : vector<8x8xf32>
    %197 = arith.truncf %196 : vector<8x8xf32> to vector<8x8xbf16>
    %c2_118 = arith.constant 2 : index
    %c0_119 = arith.constant 0 : index
    %c0_120 = arith.constant 0 : index
    %198 = vector.load %arg9[%c2_118, %c0_119, %c0_120] : memref<4x8x32xbf16, #tpu.memory_space<vmem>>, vector<1x8x32xbf16>
    %199 = vector.shape_cast %198 : vector<1x8x32xbf16> to vector<8x32xbf16>
    %cst_121 = arith.constant dense<0.000000e+00> : vector<8x32xf32>
    %200 = tpu.matmul %197, %199, %cst_121 {dimension_numbers = #tpu.dot_dimension_numbers<[1], [0], [0], [1], [0, 0, 1, 1], [], []>} : vector<8x8xbf16>, vector<8x32xbf16>, vector<8x32xf32> -> vector<8x32xf32>
    %201 = arith.addf %176, %200 : vector<8x32xf32>
    %202 = vector.extract_strided_slice %107 {offsets = [0, 0], sizes = [8, 8], strides = [1, 1]} : vector<16x8xbf16> to vector<8x8xbf16>
    %203 = vector.extract_strided_slice %115 {offsets = [0, 0], sizes = [8, 8], strides = [1, 1]} : vector<16x8xbf16> to vector<8x8xbf16>
    %204 = vector.extract_strided_slice %123 {offsets = [0, 0], sizes = [8, 8], strides = [1, 1]} : vector<16x8xbf16> to vector<8x8xbf16>
    %cst_122 = arith.constant dense<0.000000e+00> : vector<8x8xf32>
    %205 = tpu.matmul %202, %203, %cst_122 {dimension_numbers = #tpu.dot_dimension_numbers<[1], [1], [0], [0], [0, 0, 1, 0], [], []>} : vector<8x8xbf16>, vector<8x8xbf16>, vector<8x8xf32> -> vector<8x8xf32>
    %cst_123 = arith.constant 0.353553385 : f32
    %206 = vector.broadcast %cst_123 : f32 to vector<8x8xf32>
    %207 = arith.mulf %205, %206 : vector<8x8xf32>
    %cst_124 = arith.constant -1.000000e+30 : f32
    %208 = vector.broadcast %cst_124 : f32 to vector<8x8xf32>
    %209 = arith.select %27, %207, %208 : vector<8x8xi1>, vector<8x8xf32>
    %cst_125 = arith.constant dense<0xFF800000> : vector<8xf32>
    %210 = vector.multi_reduction <maximumf>, %209, %cst_125 [1] : vector<8x8xf32> to vector<8xf32>
    %211 = vector.shape_cast %210 : vector<8xf32> to vector<8x1xf32>
    %212 = vector.broadcast %211 : vector<8x1xf32> to vector<8x8xf32>
    %213 = arith.subf %209, %212 : vector<8x8xf32>
    %214 = math.exp %213 : vector<8x8xf32>
    %cst_126 = arith.constant dense<0.000000e+00> : vector<8xf32>
    %215 = vector.multi_reduction <add>, %214, %cst_126 [1] : vector<8x8xf32> to vector<8xf32>
    %216 = vector.shape_cast %215 : vector<8xf32> to vector<8x1xf32>
    %217 = arith.truncf %214 : vector<8x8xf32> to vector<8x8xbf16>
    %cst_127 = arith.constant dense<0.000000e+00> : vector<8x8xf32>
    %218 = tpu.matmul %217, %204, %cst_127 {dimension_numbers = #tpu.dot_dimension_numbers<[1], [0], [0], [1], [0, 0, 1, 1], [], []>} : vector<8x8xbf16>, vector<8x8xbf16>, vector<8x8xf32> -> vector<8x8xf32>
    %219 = tpu.reciprocal %216 {approx = true} : vector<8x1xf32> -> vector<8x1xf32>
    %220 = vector.broadcast %219 : vector<8x1xf32> to vector<8x8xf32>
    %221 = arith.mulf %218, %220 : vector<8x8xf32>
    %222 = arith.truncf %221 : vector<8x8xf32> to vector<8x8xbf16>
    %c3_128 = arith.constant 3 : index
    %c0_129 = arith.constant 0 : index
    %c0_130 = arith.constant 0 : index
    %223 = vector.load %arg9[%c3_128, %c0_129, %c0_130] : memref<4x8x32xbf16, #tpu.memory_space<vmem>>, vector<1x8x32xbf16>
    %224 = vector.shape_cast %223 : vector<1x8x32xbf16> to vector<8x32xbf16>
    %cst_131 = arith.constant dense<0.000000e+00> : vector<8x32xf32>
    %225 = tpu.matmul %222, %224, %cst_131 {dimension_numbers = #tpu.dot_dimension_numbers<[1], [0], [0], [1], [0, 0, 1, 1], [], []>} : vector<8x8xbf16>, vector<8x32xbf16>, vector<8x32xf32> -> vector<8x32xf32>
    %226 = arith.addf %201, %225 : vector<8x32xf32>
    %c0_132 = arith.constant 0 : index
    %c0_133 = arith.constant 0 : index
    %227 = vector.load %arg11[%c0_132, %c0_133] : memref<16x32xf32, #tpu.memory_space<vmem>>, vector<8x32xf32>
    tpu.vector_store %arg11[%c0_132, %c0_133], %226 {strides = array<i32>} : memref<16x32xf32, #tpu.memory_space<vmem>>, vector<8x32xf32>,
    %228 = vector.extract_strided_slice %0 {offsets = [8, 0], sizes = [8, 32], strides = [1, 1]} : vector<16x32xf32> to vector<8x32xf32>
    %229 = vector.broadcast %24 : vector<1x32xf32> to vector<8x32xf32>
    %230 = arith.addf %228, %229 : vector<8x32xf32>
    %231 = vector.extract_strided_slice %35 {offsets = [8, 0], sizes = [8, 8], strides = [1, 1]} : vector<16x8xbf16> to vector<8x8xbf16>
    %232 = vector.extract_strided_slice %43 {offsets = [8, 0], sizes = [8, 8], strides = [1, 1]} : vector<16x8xbf16> to vector<8x8xbf16>
    %233 = vector.extract_strided_slice %51 {offsets = [8, 0], sizes = [8, 8], strides = [1, 1]} : vector<16x8xbf16> to vector<8x8xbf16>
    %cst_134 = arith.constant dense<0.000000e+00> : vector<8x8xf32>
    %234 = tpu.matmul %231, %232, %cst_134 {dimension_numbers = #tpu.dot_dimension_numbers<[1], [1], [0], [0], [0, 0, 1, 0], [], []>} : vector<8x8xbf16>, vector<8x8xbf16>, vector<8x8xf32> -> vector<8x8xf32>
    %cst_135 = arith.constant 0.353553385 : f32
    %235 = vector.broadcast %cst_135 : f32 to vector<8x8xf32>
    %236 = arith.mulf %234, %235 : vector<8x8xf32>
    %cst_136 = arith.constant -1.000000e+30 : f32
    %237 = vector.broadcast %cst_136 : f32 to vector<8x8xf32>
    %238 = arith.select %27, %236, %237 : vector<8x8xi1>, vector<8x8xf32>
    %cst_137 = arith.constant dense<0xFF800000> : vector<8xf32>
    %239 = vector.multi_reduction <maximumf>, %238, %cst_137 [1] : vector<8x8xf32> to vector<8xf32>
    %240 = vector.shape_cast %239 : vector<8xf32> to vector<8x1xf32>
    %241 = vector.broadcast %240 : vector<8x1xf32> to vector<8x8xf32>
    %242 = arith.subf %238, %241 : vector<8x8xf32>
    %243 = math.exp %242 : vector<8x8xf32>
    %cst_138 = arith.constant dense<0.000000e+00> : vector<8xf32>
    %244 = vector.multi_reduction <add>, %243, %cst_138 [1] : vector<8x8xf32> to vector<8xf32>
    %245 = vector.shape_cast %244 : vector<8xf32> to vector<8x1xf32>
    %246 = arith.truncf %243 : vector<8x8xf32> to vector<8x8xbf16>
    %cst_139 = arith.constant dense<0.000000e+00> : vector<8x8xf32>
    %247 = tpu.matmul %246, %233, %cst_139 {dimension_numbers = #tpu.dot_dimension_numbers<[1], [0], [0], [1], [0, 0, 1, 1], [], []>} : vector<8x8xbf16>, vector<8x8xbf16>, vector<8x8xf32> -> vector<8x8xf32>
    %248 = tpu.reciprocal %245 {approx = true} : vector<8x1xf32> -> vector<8x1xf32>
    %249 = vector.broadcast %248 : vector<8x1xf32> to vector<8x8xf32>
    %250 = arith.mulf %247, %249 : vector<8x8xf32>
    %251 = arith.truncf %250 : vector<8x8xf32> to vector<8x8xbf16>
    %c0_140 = arith.constant 0 : index
    %c0_141 = arith.constant 0 : index
    %c0_142 = arith.constant 0 : index
    %252 = vector.load %arg9[%c0_140, %c0_141, %c0_142] : memref<4x8x32xbf16, #tpu.memory_space<vmem>>, vector<1x8x32xbf16>
    %253 = vector.shape_cast %252 : vector<1x8x32xbf16> to vector<8x32xbf16>
    %cst_143 = arith.constant dense<0.000000e+00> : vector<8x32xf32>
    %254 = tpu.matmul %251, %253, %cst_143 {dimension_numbers = #tpu.dot_dimension_numbers<[1], [0], [0], [1], [0, 0, 1, 1], [], []>} : vector<8x8xbf16>, vector<8x32xbf16>, vector<8x32xf32> -> vector<8x32xf32>
    %255 = arith.addf %230, %254 : vector<8x32xf32>
    %256 = vector.extract_strided_slice %59 {offsets = [8, 0], sizes = [8, 8], strides = [1, 1]} : vector<16x8xbf16> to vector<8x8xbf16>
    %257 = vector.extract_strided_slice %67 {offsets = [8, 0], sizes = [8, 8], strides = [1, 1]} : vector<16x8xbf16> to vector<8x8xbf16>
    %258 = vector.extract_strided_slice %75 {offsets = [8, 0], sizes = [8, 8], strides = [1, 1]} : vector<16x8xbf16> to vector<8x8xbf16>
    %cst_144 = arith.constant dense<0.000000e+00> : vector<8x8xf32>
    %259 = tpu.matmul %256, %257, %cst_144 {dimension_numbers = #tpu.dot_dimension_numbers<[1], [1], [0], [0], [0, 0, 1, 0], [], []>} : vector<8x8xbf16>, vector<8x8xbf16>, vector<8x8xf32> -> vector<8x8xf32>
    %cst_145 = arith.constant 0.353553385 : f32
    %260 = vector.broadcast %cst_145 : f32 to vector<8x8xf32>
    %261 = arith.mulf %259, %260 : vector<8x8xf32>
    %cst_146 = arith.constant -1.000000e+30 : f32
    %262 = vector.broadcast %cst_146 : f32 to vector<8x8xf32>
    %263 = arith.select %27, %261, %262 : vector<8x8xi1>, vector<8x8xf32>
    %cst_147 = arith.constant dense<0xFF800000> : vector<8xf32>
    %264 = vector.multi_reduction <maximumf>, %263, %cst_147 [1] : vector<8x8xf32> to vector<8xf32>
    %265 = vector.shape_cast %264 : vector<8xf32> to vector<8x1xf32>
    %266 = vector.broadcast %265 : vector<8x1xf32> to vector<8x8xf32>
    %267 = arith.subf %263, %266 : vector<8x8xf32>
    %268 = math.exp %267 : vector<8x8xf32>
    %cst_148 = arith.constant dense<0.000000e+00> : vector<8xf32>
    %269 = vector.multi_reduction <add>, %268, %cst_148 [1] : vector<8x8xf32> to vector<8xf32>
    %270 = vector.shape_cast %269 : vector<8xf32> to vector<8x1xf32>
    %271 = arith.truncf %268 : vector<8x8xf32> to vector<8x8xbf16>
    %cst_149 = arith.constant dense<0.000000e+00> : vector<8x8xf32>
    %272 = tpu.matmul %271, %258, %cst_149 {dimension_numbers = #tpu.dot_dimension_numbers<[1], [0], [0], [1], [0, 0, 1, 1], [], []>} : vector<8x8xbf16>, vector<8x8xbf16>, vector<8x8xf32> -> vector<8x8xf32>
    %273 = tpu.reciprocal %270 {approx = true} : vector<8x1xf32> -> vector<8x1xf32>
    %274 = vector.broadcast %273 : vector<8x1xf32> to vector<8x8xf32>
    %275 = arith.mulf %272, %274 : vector<8x8xf32>
    %276 = arith.truncf %275 : vector<8x8xf32> to vector<8x8xbf16>
    %c1_150 = arith.constant 1 : index
    %c0_151 = arith.constant 0 : index
    %c0_152 = arith.constant 0 : index
    %277 = vector.load %arg9[%c1_150, %c0_151, %c0_152] : memref<4x8x32xbf16, #tpu.memory_space<vmem>>, vector<1x8x32xbf16>
    %278 = vector.shape_cast %277 : vector<1x8x32xbf16> to vector<8x32xbf16>
    %cst_153 = arith.constant dense<0.000000e+00> : vector<8x32xf32>
    %279 = tpu.matmul %276, %278, %cst_153 {dimension_numbers = #tpu.dot_dimension_numbers<[1], [0], [0], [1], [0, 0, 1, 1], [], []>} : vector<8x8xbf16>, vector<8x32xbf16>, vector<8x32xf32> -> vector<8x32xf32>
    %280 = arith.addf %255, %279 : vector<8x32xf32>
    %281 = vector.extract_strided_slice %83 {offsets = [8, 0], sizes = [8, 8], strides = [1, 1]} : vector<16x8xbf16> to vector<8x8xbf16>
    %282 = vector.extract_strided_slice %91 {offsets = [8, 0], sizes = [8, 8], strides = [1, 1]} : vector<16x8xbf16> to vector<8x8xbf16>
    %283 = vector.extract_strided_slice %99 {offsets = [8, 0], sizes = [8, 8], strides = [1, 1]} : vector<16x8xbf16> to vector<8x8xbf16>
    %cst_154 = arith.constant dense<0.000000e+00> : vector<8x8xf32>
    %284 = tpu.matmul %281, %282, %cst_154 {dimension_numbers = #tpu.dot_dimension_numbers<[1], [1], [0], [0], [0, 0, 1, 0], [], []>} : vector<8x8xbf16>, vector<8x8xbf16>, vector<8x8xf32> -> vector<8x8xf32>
    %cst_155 = arith.constant 0.353553385 : f32
    %285 = vector.broadcast %cst_155 : f32 to vector<8x8xf32>
    %286 = arith.mulf %284, %285 : vector<8x8xf32>
    %cst_156 = arith.constant -1.000000e+30 : f32
    %287 = vector.broadcast %cst_156 : f32 to vector<8x8xf32>
    %288 = arith.select %27, %286, %287 : vector<8x8xi1>, vector<8x8xf32>
    %cst_157 = arith.constant dense<0xFF800000> : vector<8xf32>
    %289 = vector.multi_reduction <maximumf>, %288, %cst_157 [1] : vector<8x8xf32> to vector<8xf32>
    %290 = vector.shape_cast %289 : vector<8xf32> to vector<8x1xf32>
    %291 = vector.broadcast %290 : vector<8x1xf32> to vector<8x8xf32>
    %292 = arith.subf %288, %291 : vector<8x8xf32>
    %293 = math.exp %292 : vector<8x8xf32>
    %cst_158 = arith.constant dense<0.000000e+00> : vector<8xf32>
    %294 = vector.multi_reduction <add>, %293, %cst_158 [1] : vector<8x8xf32> to vector<8xf32>
    %295 = vector.shape_cast %294 : vector<8xf32> to vector<8x1xf32>
    %296 = arith.truncf %293 : vector<8x8xf32> to vector<8x8xbf16>
    %cst_159 = arith.constant dense<0.000000e+00> : vector<8x8xf32>
    %297 = tpu.matmul %296, %283, %cst_159 {dimension_numbers = #tpu.dot_dimension_numbers<[1], [0], [0], [1], [0, 0, 1, 1], [], []>} : vector<8x8xbf16>, vector<8x8xbf16>, vector<8x8xf32> -> vector<8x8xf32>
    %298 = tpu.reciprocal %295 {approx = true} : vector<8x1xf32> -> vector<8x1xf32>
    %299 = vector.broadcast %298 : vector<8x1xf32> to vector<8x8xf32>
    %300 = arith.mulf %297, %299 : vector<8x8xf32>
    %301 = arith.truncf %300 : vector<8x8xf32> to vector<8x8xbf16>
    %c2_160 = arith.constant 2 : index
    %c0_161 = arith.constant 0 : index
    %c0_162 = arith.constant 0 : index
    %302 = vector.load %arg9[%c2_160, %c0_161, %c0_162] : memref<4x8x32xbf16, #tpu.memory_space<vmem>>, vector<1x8x32xbf16>
    %303 = vector.shape_cast %302 : vector<1x8x32xbf16> to vector<8x32xbf16>
    %cst_163 = arith.constant dense<0.000000e+00> : vector<8x32xf32>
    %304 = tpu.matmul %301, %303, %cst_163 {dimension_numbers = #tpu.dot_dimension_numbers<[1], [0], [0], [1], [0, 0, 1, 1], [], []>} : vector<8x8xbf16>, vector<8x32xbf16>, vector<8x32xf32> -> vector<8x32xf32>
    %305 = arith.addf %280, %304 : vector<8x32xf32>
    %306 = vector.extract_strided_slice %107 {offsets = [8, 0], sizes = [8, 8], strides = [1, 1]} : vector<16x8xbf16> to vector<8x8xbf16>
    %307 = vector.extract_strided_slice %115 {offsets = [8, 0], sizes = [8, 8], strides = [1, 1]} : vector<16x8xbf16> to vector<8x8xbf16>
    %308 = vector.extract_strided_slice %123 {offsets = [8, 0], sizes = [8, 8], strides = [1, 1]} : vector<16x8xbf16> to vector<8x8xbf16>
    %cst_164 = arith.constant dense<0.000000e+00> : vector<8x8xf32>
    %309 = tpu.matmul %306, %307, %cst_164 {dimension_numbers = #tpu.dot_dimension_numbers<[1], [1], [0], [0], [0, 0, 1, 0], [], []>} : vector<8x8xbf16>, vector<8x8xbf16>, vector<8x8xf32> -> vector<8x8xf32>
    %cst_165 = arith.constant 0.353553385 : f32
    %310 = vector.broadcast %cst_165 : f32 to vector<8x8xf32>
    %311 = arith.mulf %309, %310 : vector<8x8xf32>
    %cst_166 = arith.constant -1.000000e+30 : f32
    %312 = vector.broadcast %cst_166 : f32 to vector<8x8xf32>
    %313 = arith.select %27, %311, %312 : vector<8x8xi1>, vector<8x8xf32>
    %cst_167 = arith.constant dense<0xFF800000> : vector<8xf32>
    %314 = vector.multi_reduction <maximumf>, %313, %cst_167 [1] : vector<8x8xf32> to vector<8xf32>
    %315 = vector.shape_cast %314 : vector<8xf32> to vector<8x1xf32>
    %316 = vector.broadcast %315 : vector<8x1xf32> to vector<8x8xf32>
    %317 = arith.subf %313, %316 : vector<8x8xf32>
    %318 = math.exp %317 : vector<8x8xf32>
    %cst_168 = arith.constant dense<0.000000e+00> : vector<8xf32>
    %319 = vector.multi_reduction <add>, %318, %cst_168 [1] : vector<8x8xf32> to vector<8xf32>
    %320 = vector.shape_cast %319 : vector<8xf32> to vector<8x1xf32>
    %321 = arith.truncf %318 : vector<8x8xf32> to vector<8x8xbf16>
    %cst_169 = arith.constant dense<0.000000e+00> : vector<8x8xf32>
    %322 = tpu.matmul %321, %308, %cst_169 {dimension_numbers = #tpu.dot_dimension_numbers<[1], [0], [0], [1], [0, 0, 1, 1], [], []>} : vector<8x8xbf16>, vector<8x8xbf16>, vector<8x8xf32> -> vector<8x8xf32>
    %323 = tpu.reciprocal %320 {approx = true} : vector<8x1xf32> -> vector<8x1xf32>
    %324 = vector.broadcast %323 : vector<8x1xf32> to vector<8x8xf32>
    %325 = arith.mulf %322, %324 : vector<8x8xf32>
    %326 = arith.truncf %325 : vector<8x8xf32> to vector<8x8xbf16>
    %c3_170 = arith.constant 3 : index
    %c0_171 = arith.constant 0 : index
    %c0_172 = arith.constant 0 : index
    %327 = vector.load %arg9[%c3_170, %c0_171, %c0_172] : memref<4x8x32xbf16, #tpu.memory_space<vmem>>, vector<1x8x32xbf16>
    %328 = vector.shape_cast %327 : vector<1x8x32xbf16> to vector<8x32xbf16>
    %cst_173 = arith.constant dense<0.000000e+00> : vector<8x32xf32>
    %329 = tpu.matmul %326, %328, %cst_173 {dimension_numbers = #tpu.dot_dimension_numbers<[1], [0], [0], [1], [0, 0, 1, 1], [], []>} : vector<8x8xbf16>, vector<8x32xbf16>, vector<8x32xf32> -> vector<8x32xf32>
    %330 = arith.addf %305, %329 : vector<8x32xf32>
    %c8 = arith.constant 8 : index
    %c0_174 = arith.constant 0 : index
    %331 = vector.load %arg11[%c8, %c0_174] : memref<16x32xf32, #tpu.memory_space<vmem>>, vector<8x32xf32>
    tpu.vector_store %arg11[%c8, %c0_174], %330 {strides = array<i32>} : memref<16x32xf32, #tpu.memory_space<vmem>>, vector<8x32xf32>,
    return
  }
}

</mosaic_0001>

<llo_original>
// kernel: tpu_custom_call.1
$region0: #{tpu_custom_call.1}
  #allocation0 [shape = 'u32[]', space=smem, size = 0x4, offset = 0x4, fixed_abs, tag = 'smem constant byte address 0x4 - core index']
  #allocation1 [shape = 'u32[144,128]{1,0:T(1,128)}', space=vmem, size = 0x12000, scoped, tag = 'internal scratch']
  %s0 = inlined_call_operand.vmem [shape: f32[16,32], index: 0, kind: input, shape index: {}]
  %s1 = inlined_call_operand.vmem [shape: f32[1,32], index: 1, kind: input, shape index: {}]
  %s2 = inlined_call_operand.vmem [shape: f32[1,32], index: 2, kind: input, shape index: {}]
  %s3 = inlined_call_operand.vmem [shape: bf16[4,32,8], index: 3, kind: input, shape index: {}]
  %s4 = inlined_call_operand.vmem [shape: f32[4,1,8], index: 4, kind: input, shape index: {}]
  %s5 = inlined_call_operand.vmem [shape: bf16[4,32,8], index: 5, kind: input, shape index: {}]
  %s6 = inlined_call_operand.vmem [shape: f32[4,1,8], index: 6, kind: input, shape index: {}]
  %s7 = inlined_call_operand.vmem [shape: bf16[4,32,8], index: 7, kind: input, shape index: {}]
  %s8 = inlined_call_operand.vmem [shape: f32[4,1,8], index: 8, kind: input, shape index: {}]
  %s9 = inlined_call_operand.vmem [shape: bf16[4,8,32], index: 9, kind: input, shape index: {}]
  %s10 = inlined_call_operand.vmem [shape: f32[1,32], index: 10, kind: input, shape index: {}]
  %s11 = inlined_call_operand.hbm [shape: f32[16,32], index: 11, kind: output, shape index: {}]
  %s12 = sld [smem:[#allocation0]]
  $region54: #{tpu_custom_call.1} parent=0
    _
  %s14 = ssub.s32 1, %s12
  %s15 = scalar_select 0, %s14, %s12
  $region1: #{tpu_custom_call.1} parent=0
    #allocation2 [shape = 'u8[8192]{0}', space=vmem, size = 0x2000, scoped, tag = 'output window, operand 0, single buffered']
    #allocation3 [shape = 's32[1]{0}', space=sflag, size = 0x4, scoped, tag = 'scoped memory for tpu_custom_call.1']
    %16 = vsyncpa [#allocation3], 0
    // Predicated region
    $region2: #{tpu_custom_call.1} parent=1 // pred_check
      _
    $region3: #{tpu_custom_call.1} parent=1 // pred_check_branch
      %18 = sbr.rel (0) target = $region5
    $region4: #{tpu_custom_call.1} parent=1 // pred_region
      _
    $region5: #{tpu_custom_call.1} parent=1 // pred_fallthru
      _
    // Predicated region
    $region6: #{tpu_custom_call.1} parent=1 // pred_check
      _
    $region7: #{tpu_custom_call.1} parent=1 // pred_check_branch
      %20 = sbr.rel (0) target = $region9
    $region8: #{tpu_custom_call.1} parent=1 // pred_region
      _
    $region9: #{tpu_custom_call.1} parent=1 // pred_fallthru
      _
    // Predicated region
    $region10: #{tpu_custom_call.1} parent=1 // pred_check
      _
    $region11: #{tpu_custom_call.1} parent=1 // pred_check_branch
      %22 = sbr.rel (0) target = $region13
    $region12: #{tpu_custom_call.1} parent=1 // pred_region
      _
    $region13: #{tpu_custom_call.1} parent=1 // pred_fallthru
      _
    // Predicated region
    $region14: #{tpu_custom_call.1} parent=1 // pred_check
      _
    $region15: #{tpu_custom_call.1} parent=1 // pred_check_branch
      %24 = sbr.rel (0) target = $region17
    $region16: #{tpu_custom_call.1} parent=1 // pred_region
      _
    $region17: #{tpu_custom_call.1} parent=1 // pred_fallthru
      _
    // Predicated region
    $region18: #{tpu_custom_call.1} parent=1 // pred_check
      _
    $region19: #{tpu_custom_call.1} parent=1 // pred_check_branch
      %26 = sbr.rel (0) target = $region21
    $region20: #{tpu_custom_call.1} parent=1 // pred_region
      _
    $region21: #{tpu_custom_call.1} parent=1 // pred_fallthru
      _
    // Predicated region
    $region22: #{tpu_custom_call.1} parent=1 // pred_check
      _
    $region23: #{tpu_custom_call.1} parent=1 // pred_check_branch
      %28 = sbr.rel (0) target = $region25
    $region24: #{tpu_custom_call.1} parent=1 // pred_region
      _
    $region25: #{tpu_custom_call.1} parent=1 // pred_fallthru
      _
    // Predicated region
    $region26: #{tpu_custom_call.1} parent=1 // pred_check
      _
    $region27: #{tpu_custom_call.1} parent=1 // pred_check_branch
      %30 = sbr.rel (0) target = $region29
    $region28: #{tpu_custom_call.1} parent=1 // pred_region
      _
    $region29: #{tpu_custom_call.1} parent=1 // pred_fallthru
      _
    // Predicated region
    $region30: #{tpu_custom_call.1} parent=1 // pred_check
      _
    $region31: #{tpu_custom_call.1} parent=1 // pred_check_branch
      %32 = sbr.rel (0) target = $region33
    $region32: #{tpu_custom_call.1} parent=1 // pred_region
      _
    $region33: #{tpu_custom_call.1} parent=1 // pred_fallthru
      _
    // Predicated region
    $region34: #{tpu_custom_call.1} parent=1 // pred_check
      _
    $region35: #{tpu_custom_call.1} parent=1 // pred_check_branch
      %34 = sbr.rel (0) target = $region37
    $region36: #{tpu_custom_call.1} parent=1 // pred_region
      _
    $region37: #{tpu_custom_call.1} parent=1 // pred_fallthru
      _
    // Predicated region
    $region38: #{tpu_custom_call.1} parent=1 // pred_check
      _
    $region39: #{tpu_custom_call.1} parent=1 // pred_check_branch
      %36 = sbr.rel (0) target = $region41
    $region40: #{tpu_custom_call.1} parent=1 // pred_region
      _
    $region41: #{tpu_custom_call.1} parent=1 // pred_fallthru
      _
    // Predicated region
    $region42: #{tpu_custom_call.1} parent=1 // pred_check
      _
    $region43: #{tpu_custom_call.1} parent=1 // pred_check_branch
      %38 = sbr.rel (0) target = $region45
    $region44: #{tpu_custom_call.1} parent=1 // pred_region
      _
    $region45: #{tpu_custom_call.1} parent=1 // pred_fallthru
      _
    %v40 = vld [vmem:[%s0] sm:$0xff]
    %v41 = vld [vmem:[%s0 + $0x8] sm:$0xff]
    %vm42 = vcmask 261120
    %v43 = vsel %vm42, %v40, 0.0
    %44 = vadd.xlane.f32.xlu0 %v43
    %v45 = vpop.xlane.xlu0 %44
    %v46 = vsel %vm42, %v41, 0.0
    %47 = vadd.xlane.f32.xlu0 %v46
    %v48 = vpop.xlane.xlu0 %47
    %v49 = vrcp.pop 32.0
    %v50 = vmul.f32 %v45, %v49
    %v51 = vmul.f32 %v48, %v49
    %v52 = vsub.f32 %v40, %v50
    %v53 = vsub.f32 %v41, %v51
    %v54 = vmul.f32 %v52, %v52
    %v55 = vmul.f32 %v53, %v53
    %v56 = vsel %vm42, %v54, 0.0
    %57 = vadd.xlane.f32.xlu0 %v56
    %v58 = vpop.xlane.xlu0 %57
    %v59 = vsel %vm42, %v55, 0.0
    %60 = vadd.xlane.f32.xlu0 %v59
    %v61 = vpop.xlane.xlu0 %60
    %v62 = vmul.f32 %v58, %v49
    %v63 = vmul.f32 %v61, %v49
    %v64 = vadd.f32 %v62, 1e-05
    %v65 = vadd.f32 %v63, 1e-05
    %v66 = vrsqrt.pop %v64
    %v67 = vrsqrt.pop %v65
    %v68 = vmul.f32 %v52, %v66
    %v69 = vmul.f32 %v53, %v67
    %v70 = vld [vmem:[%s1] sm:$0x1]
    %v72 = vlaneseq
    %v73 = vshrl.u32 %v72, 7
    %v74 = vsub.s32 0, %v73
    %v75 = vrot.slane %v70, %v74
    %v77 = vmul.f32 %v68, %v75
    %v78 = vmul.f32 %v69, %v75
    %v79 = vld [vmem:[%s2] sm:$0x1]
    %v81 = vlaneseq
    %v82 = vshrl.u32 %v81, 7
    %v83 = vsub.s32 0, %v82
    %v84 = vrot.slane %v79, %v83
    %v86 = vadd.f32 %v77, %v84
    %v87 = vadd.f32 %v78, %v84
    %v88 = vpack.c.bf16 %v87, %v86
    %v89 = vld [vmem:[%s10] sm:$0x1]
    %v90 = vlaneseq
    %v91 = vshrl.u32 %v90, 7
    %v92 = vlaneseq
    %v93 = vand.u32 %v92, 127
    %vm94 = vcmp.le.s32.totalorder %v93, %v91
    %v95 = vld [vmem:[%s3] sm:$0xf]
    %v96 = vld [vmem:[%s3 + $0x4] sm:$0xf]
    %v97 = vld [vmem:[%s3 + $0x8] sm:$0xf]
    %v98 = vld [vmem:[%s3 + $0xc] sm:$0xf]
    %v99 = vld [vmem:[%s4] sm:$0x1]
    %v101 = vlaneseq
    %v102 = vshrl.u32 %v101, 7
    %v103 = vsub.s32 0, %v102
    %v104 = vrot.slane %v99, %v103
    %v110 = vunpack.c.l.b16 %v95
    %v111 = vunpack.c.l.b16 %v96
    %v112 = vunpack.c.l.b16 %v97
    %v113 = vunpack.c.l.b16 %v98
    %v114 = vpack.c.b16 %v111, %v110
    %v115 = vpack.c.b16 %v113, %v112
    %v119 = vsel %vm42, %v88, 0
    %121 = vmatprep.subr.bf16.mxu0 0
    %122 = vmatpush1.bf16.msra.mxu0 0
    %123 = vmatprep.subr.bf16.mxu0 0
    %124 = vmatpush1.bf16.msra.mxu0 0
    %125 = vmatprep.subr.bf16.mxu0 0
    %126 = vmatpush1.bf16.msra.mxu0 0
    %127 = vmatprep.subr.bf16.mxu0 0
    %128 = vmatpush1.bf16.msra.mxu0 0
    %129 = vmatprep.subr.bf16.mxu0 0
    %130 = vmatpush1.bf16.msra.mxu0 0
    %131 = vmatprep.subr.bf16.mxu0 0
    %132 = vmatpush1.bf16.msra.mxu0 0
    %133 = vmatprep.subr.bf16.mxu0 0
    %134 = vmatpush1.bf16.msra.mxu0 %v115
    %135 = vmatprep.subr.bf16.mxu0 0
    %136 = vmatpush1.bf16.msra.mxu0 %v114
    %137 = vmatprep.subr.bf16.mxu0 0
    %138 = vmatpush2.bf16.msra.mxu0 0
    %139 = vmatprep.subr.bf16.mxu0 0
    %140 = vmatpush2.bf16.msra.mxu0 0
    %141 = vmatprep.subr.bf16.mxu0 0
    %142 = vmatpush2.bf16.msra.mxu0 0
    %143 = vmatprep.subr.bf16.mxu0 0
    %144 = vmatpush2.bf16.msra.mxu0 0
    %145 = vmatprep.subr.bf16.mxu0 0
    %146 = vmatpush2.bf16.msra.mxu0 0
    %147 = vmatprep.subr.bf16.mxu0 0
    %148 = vmatpush2.bf16.msra.mxu0 0
    %149 = vmatprep.subr.bf16.mxu0 0
    %150 = vmatpush2.bf16.msra.mxu0 0
    %151 = vmatprep.subr.bf16.mxu0 0
    %152 = vmatpush2.bf16.msra.mxu0 0
    %153 = vmatprep.mubr.bf16.mxu0 0
    %154 = vmatmul.mubr.bf16.gmra.mxu0 %v119
    %v155 = vpop.f32.mrf.mxu0
    %v156 = vadd.f32 %v104, %v155
    %v157 = vpop.f32.mrf.mxu0
    %v158 = vpop.f32.mrf.mxu0
    %v159 = vadd.f32 %v104, %v158
    %v160 = vpop.f32.mrf.mxu0
    %161 = vdwg.mxu0
    %v162 = vpack.c.bf16 %v159, %v156
    %v163 = vld [vmem:[%s5] sm:$0xf]
    %v164 = vld [vmem:[%s5 + $0x4] sm:$0xf]
    %v165 = vld [vmem:[%s5 + $0x8] sm:$0xf]
    %v166 = vld [vmem:[%s5 + $0xc] sm:$0xf]
    %v167 = vld [vmem:[%s6] sm:$0x1]
    %v169 = vlaneseq
    %v170 = vshrl.u32 %v169, 7
    %v171 = vsub.s32 0, %v170
    %v172 = vrot.slane %v167, %v171
    %v178 = vunpack.c.l.b16 %v163
    %v179 = vunpack.c.l.b16 %v164
    %v180 = vunpack.c.l.b16 %v165
    %v181 = vunpack.c.l.b16 %v166
    %v182 = vpack.c.b16 %v179, %v178
    %v183 = vpack.c.b16 %v181, %v180
    %186 = vmatprep.subr.bf16.mxu0 0
    %187 = vmatpush1.bf16.msra.mxu0 0
    %188 = vmatprep.subr.bf16.mxu0 0
    %189 = vmatpush1.bf16.msra.mxu0 0
    %190 = vmatprep.subr.bf16.mxu0 0
    %191 = vmatpush1.bf16.msra.mxu0 0
    %192 = vmatprep.subr.bf16.mxu0 0
    %193 = vmatpush1.bf16.msra.mxu0 0
    %194 = vmatprep.subr.bf16.mxu0 0
    %195 = vmatpush1.bf16.msra.mxu0 0
    %196 = vmatprep.subr.bf16.mxu0 0
    %197 = vmatpush1.bf16.msra.mxu0 0
    %198 = vmatprep.subr.bf16.mxu0 0
    %199 = vmatpush1.bf16.msra.mxu0 %v183
    %200 = vmatprep.subr.bf16.mxu0 0
    %201 = vmatpush1.bf16.msra.mxu0 %v182
    %202 = vmatprep.subr.bf16.mxu0 0
    %203 = vmatpush2.bf16.msra.mxu0 0
    %204 = vmatprep.subr.bf16.mxu0 0
    %205 = vmatpush2.bf16.msra.mxu0 0
    %206 = vmatprep.subr.bf16.mxu0 0
    %207 = vmatpush2.bf16.msra.mxu0 0
    %208 = vmatprep.subr.bf16.mxu0 0
    %209 = vmatpush2.bf16.msra.mxu0 0
    %210 = vmatprep.subr.bf16.mxu0 0
    %211 = vmatpush2.bf16.msra.mxu0 0
    %212 = vmatprep.subr.bf16.mxu0 0
    %213 = vmatpush2.bf16.msra.mxu0 0
    %214 = vmatprep.subr.bf16.mxu0 0
    %215 = vmatpush2.bf16.msra.mxu0 0
    %216 = vmatprep.subr.bf16.mxu0 0
    %217 = vmatpush2.bf16.msra.mxu0 0
    %218 = vmatprep.mubr.bf16.mxu0 0
    %219 = vmatmul.mubr.bf16.gmra.mxu0 %v119
    %v220 = vpop.f32.mrf.mxu0
    %v221 = vadd.f32 %v172, %v220
    %v222 = vpop.f32.mrf.mxu0
    %v223 = vpop.f32.mrf.mxu0
    %v224 = vadd.f32 %v172, %v223
    %v225 = vpop.f32.mrf.mxu0
    %226 = vdwg.mxu0
    %v227 = vpack.c.bf16 %v224, %v221
    %v228 = vld [vmem:[%s7] sm:$0xf]
    %v229 = vld [vmem:[%s7 + $0x4] sm:$0xf]
    %v230 = vld [vmem:[%s7 + $0x8] sm:$0xf]
    %v231 = vld [vmem:[%s7 + $0xc] sm:$0xf]
    %v232 = vld [vmem:[%s8] sm:$0x1]
    %v234 = vlaneseq
    %v235 = vshrl.u32 %v234, 7
    %v236 = vsub.s32 0, %v235
    %v237 = vrot.slane %v232, %v236
    %v243 = vunpack.c.l.b16 %v228
    %v244 = vunpack.c.l.b16 %v229
    %v245 = vunpack.c.l.b16 %v230
    %v246 = vunpack.c.l.b16 %v231
    %v247 = vpack.c.b16 %v244, %v243
    %v248 = vpack.c.b16 %v246, %v245
    %251 = vmatprep.subr.bf16.mxu0 0
    %252 = vmatpush1.bf16.msra.mxu0 0
    %253 = vmatprep.subr.bf16.mxu0 0
    %254 = vmatpush1.bf16.msra.mxu0 0
    %255 = vmatprep.subr.bf16.mxu0 0
    %256 = vmatpush1.bf16.msra.mxu0 0
    %257 = vmatprep.subr.bf16.mxu0 0
    %258 = vmatpush1.bf16.msra.mxu0 0
    %259 = vmatprep.subr.bf16.mxu0 0
    %260 = vmatpush1.bf16.msra.mxu0 0
    %261 = vmatprep.subr.bf16.mxu0 0
    %262 = vmatpush1.bf16.msra.mxu0 0
    %263 = vmatprep.subr.bf16.mxu0 0
    %264 = vmatpush1.bf16.msra.mxu0 %v248
    %265 = vmatprep.subr.bf16.mxu0 0
    %266 = vmatpush1.bf16.msra.mxu0 %v247
    %267 = vmatprep.subr.bf16.mxu0 0
    %268 = vmatpush2.bf16.msra.mxu0 0
    %269 = vmatprep.subr.bf16.mxu0 0
    %270 = vmatpush2.bf16.msra.mxu0 0
    %271 = vmatprep.subr.bf16.mxu0 0
    %272 = vmatpush2.bf16.msra.mxu0 0
    %273 = vmatprep.subr.bf16.mxu0 0
    %274 = vmatpush2.bf16.msra.mxu0 0
    %275 = vmatprep.subr.bf16.mxu0 0
    %276 = vmatpush2.bf16.msra.mxu0 0
    %277 = vmatprep.subr.bf16.mxu0 0
    %278 = vmatpush2.bf16.msra.mxu0 0
    %279 = vmatprep.subr.bf16.mxu0 0
    %280 = vmatpush2.bf16.msra.mxu0 0
    %281 = vmatprep.subr.bf16.mxu0 0
    %282 = vmatpush2.bf16.msra.mxu0 0
    %283 = vmatprep.mubr.bf16.mxu0 0
    %284 = vmatmul.mubr.bf16.gmra.mxu0 %v119
    %v285 = vpop.f32.mrf.mxu0
    %v286 = vadd.f32 %v237, %v285
    %v287 = vpop.f32.mrf.mxu0
    %v288 = vpop.f32.mrf.mxu0
    %v289 = vadd.f32 %v237, %v288
    %v290 = vpop.f32.mrf.mxu0
    %291 = vdwg.mxu0
    %v292 = vpack.c.bf16 %v289, %v286
    %s293 = scalar_lea.vmem %s3, 16
    %v294 = vld [vmem:[%s293] sm:$0xf]
    %v295 = vld [vmem:[%s293 + $0x4] sm:$0xf]
    %v296 = vld [vmem:[%s293 + $0x8] sm:$0xf]
    %v297 = vld [vmem:[%s293 + $0xc] sm:$0xf]
    %s298 = scalar_lea.vmem %s4, 1
    %v299 = vld [vmem:[%s298] sm:$0x1]
    %v301 = vlaneseq
    %v302 = vshrl.u32 %v301, 7
    %v303 = vsub.s32 0, %v302
    %v304 = vrot.slane %v299, %v303
    %v310 = vunpack.c.l.b16 %v294
    %v311 = vunpack.c.l.b16 %v295
    %v312 = vunpack.c.l.b16 %v296
    %v313 = vunpack.c.l.b16 %v297
    %v314 = vpack.c.b16 %v311, %v310
    %v315 = vpack.c.b16 %v313, %v312
    %318 = vmatprep.subr.bf16.mxu0 0
    %319 = vmatpush1.bf16.msra.mxu0 0
    %320 = vmatprep.subr.bf16.mxu0 0
    %321 = vmatpush1.bf16.msra.mxu0 0
    %322 = vmatprep.subr.bf16.mxu0 0
    %323 = vmatpush1.bf16.msra.mxu0 0
    %324 = vmatprep.subr.bf16.mxu0 0
    %325 = vmatpush1.bf16.msra.mxu0 0
    %326 = vmatprep.subr.bf16.mxu0 0
    %327 = vmatpush1.bf16.msra.mxu0 0
    %328 = vmatprep.subr.bf16.mxu0 0
    %329 = vmatpush1.bf16.msra.mxu0 0
    %330 = vmatprep.subr.bf16.mxu0 0
    %331 = vmatpush1.bf16.msra.mxu0 %v315
    %332 = vmatprep.subr.bf16.mxu0 0
    %333 = vmatpush1.bf16.msra.mxu0 %v314
    %334 = vmatprep.subr.bf16.mxu0 0
    %335 = vmatpush2.bf16.msra.mxu0 0
    %336 = vmatprep.subr.bf16.mxu0 0
    %337 = vmatpush2.bf16.msra.mxu0 0
    %338 = vmatprep.subr.bf16.mxu0 0
    %339 = vmatpush2.bf16.msra.mxu0 0
    %340 = vmatprep.subr.bf16.mxu0 0
    %341 = vmatpush2.bf16.msra.mxu0 0
    %342 = vmatprep.subr.bf16.mxu0 0
    %343 = vmatpush2.bf16.msra.mxu0 0
    %344 = vmatprep.subr.bf16.mxu0 0
    %345 = vmatpush2.bf16.msra.mxu0 0
    %346 = vmatprep.subr.bf16.mxu0 0
    %347 = vmatpush2.bf16.msra.mxu0 0
    %348 = vmatprep.subr.bf16.mxu0 0
    %349 = vmatpush2.bf16.msra.mxu0 0
    %350 = vmatprep.mubr.bf16.mxu0 0
    %351 = vmatmul.mubr.bf16.gmra.mxu0 %v119
    %v352 = vpop.f32.mrf.mxu0
    %v353 = vadd.f32 %v304, %v352
    %v354 = vpop.f32.mrf.mxu0
    %v355 = vpop.f32.mrf.mxu0
    %v356 = vadd.f32 %v304, %v355
    %v357 = vpop.f32.mrf.mxu0
    %358 = vdwg.mxu0
    %v359 = vpack.c.bf16 %v356, %v353
    %s360 = scalar_lea.vmem %s5, 16
    %v361 = vld [vmem:[%s360] sm:$0xf]
    %v362 = vld [vmem:[%s360 + $0x4] sm:$0xf]
    %v363 = vld [vmem:[%s360 + $0x8] sm:$0xf]
    %v364 = vld [vmem:[%s360 + $0xc] sm:$0xf]
    %s365 = scalar_lea.vmem %s6, 1
    %v366 = vld [vmem:[%s365] sm:$0x1]
    %v368 = vlaneseq
    %v369 = vshrl.u32 %v368, 7
    %v370 = vsub.s32 0, %v369
    %v371 = vrot.slane %v366, %v370
    %v377 = vunpack.c.l.b16 %v361
    %v378 = vunpack.c.l.b16 %v362
    %v379 = vunpack.c.l.b16 %v363
    %v380 = vunpack.c.l.b16 %v364
    %v381 = vpack.c.b16 %v378, %v377
    %v382 = vpack.c.b16 %v380, %v379
    %385 = vmatprep.subr.bf16.mxu0 0
    %386 = vmatpush1.bf16.msra.mxu0 0
    %387 = vmatprep.subr.bf16.mxu0 0
    %388 = vmatpush1.bf16.msra.mxu0 0
    %389 = vmatprep.subr.bf16.mxu0 0
    %390 = vmatpush1.bf16.msra.mxu0 0
    %391 = vmatprep.subr.bf16.mxu0 0
    %392 = vmatpush1.bf16.msra.mxu0 0
    %393 = vmatprep.subr.bf16.mxu0 0
    %394 = vmatpush1.bf16.msra.mxu0 0
    %395 = vmatprep.subr.bf16.mxu0 0
    %396 = vmatpush1.bf16.msra.mxu0 0
    %397 = vmatprep.subr.bf16.mxu0 0
    %398 = vmatpush1.bf16.msra.mxu0 %v382
    %399 = vmatprep.subr.bf16.mxu0 0
    %400 = vmatpush1.bf16.msra.mxu0 %v381
    %401 = vmatprep.subr.bf16.mxu0 0
    %402 = vmatpush2.bf16.msra.mxu0 0
    %403 = vmatprep.subr.bf16.mxu0 0
    %404 = vmatpush2.bf16.msra.mxu0 0
    %405 = vmatprep.subr.bf16.mxu0 0
    %406 = vmatpush2.bf16.msra.mxu0 0
    %407 = vmatprep.subr.bf16.mxu0 0
    %408 = vmatpush2.bf16.msra.mxu0 0
    %409 = vmatprep.subr.bf16.mxu0 0
    %410 = vmatpush2.bf16.msra.mxu0 0
    %411 = vmatprep.subr.bf16.mxu0 0
    %412 = vmatpush2.bf16.msra.mxu0 0
    %413 = vmatprep.subr.bf16.mxu0 0
    %414 = vmatpush2.bf16.msra.mxu0 0
    %415 = vmatprep.subr.bf16.mxu0 0
    %416 = vmatpush2.bf16.msra.mxu0 0
    %417 = vmatprep.mubr.bf16.mxu0 0
    %418 = vmatmul.mubr.bf16.gmra.mxu0 %v119
    %v419 = vpop.f32.mrf.mxu0
    %v420 = vadd.f32 %v371, %v419
    %v421 = vpop.f32.mrf.mxu0
    %v422 = vpop.f32.mrf.mxu0
    %v423 = vadd.f32 %v371, %v422
    %v424 = vpop.f32.mrf.mxu0
    %425 = vdwg.mxu0
    %v426 = vpack.c.bf16 %v423, %v420
    %s427 = scalar_lea.vmem %s7, 16
    %v428 = vld [vmem:[%s427] sm:$0xf]
    %v429 = vld [vmem:[%s427 + $0x4] sm:$0xf]
    %v430 = vld [vmem:[%s427 + $0x8] sm:$0xf]
    %v431 = vld [vmem:[%s427 + $0xc] sm:$0xf]
    %s432 = scalar_lea.vmem %s8, 1
    %v433 = vld [vmem:[%s432] sm:$0x1]
    %v435 = vlaneseq
    %v436 = vshrl.u32 %v435, 7
    %v437 = vsub.s32 0, %v436
    %v438 = vrot.slane %v433, %v437
    %v444 = vunpack.c.l.b16 %v428
    %v445 = vunpack.c.l.b16 %v429
    %v446 = vunpack.c.l.b16 %v430
    %v447 = vunpack.c.l.b16 %v431
    %v448 = vpack.c.b16 %v445, %v444
    %v449 = vpack.c.b16 %v447, %v446
    %452 = vmatprep.subr.bf16.mxu0 0
    %453 = vmatpush1.bf16.msra.mxu0 0
    %454 = vmatprep.subr.bf16.mxu0 0
    %455 = vmatpush1.bf16.msra.mxu0 0
    %456 = vmatprep.subr.bf16.mxu0 0
    %457 = vmatpush1.bf16.msra.mxu0 0
    %458 = vmatprep.subr.bf16.mxu0 0
    %459 = vmatpush1.bf16.msra.mxu0 0
    %460 = vmatprep.subr.bf16.mxu0 0
    %461 = vmatpush1.bf16.msra.mxu0 0
    %462 = vmatprep.subr.bf16.mxu0 0
    %463 = vmatpush1.bf16.msra.mxu0 0
    %464 = vmatprep.subr.bf16.mxu0 0
    %465 = vmatpush1.bf16.msra.mxu0 %v449
    %466 = vmatprep.subr.bf16.mxu0 0
    %467 = vmatpush1.bf16.msra.mxu0 %v448
    %468 = vmatprep.subr.bf16.mxu0 0
    %469 = vmatpush2.bf16.msra.mxu0 0
    %470 = vmatprep.subr.bf16.mxu0 0
    %471 = vmatpush2.bf16.msra.mxu0 0
    %472 = vmatprep.subr.bf16.mxu0 0
    %473 = vmatpush2.bf16.msra.mxu0 0
    %474 = vmatprep.subr.bf16.mxu0 0
    %475 = vmatpush2.bf16.msra.mxu0 0
    %476 = vmatprep.subr.bf16.mxu0 0
    %477 = vmatpush2.bf16.msra.mxu0 0
    %478 = vmatprep.subr.bf16.mxu0 0
    %479 = vmatpush2.bf16.msra.mxu0 0
    %480 = vmatprep.subr.bf16.mxu0 0
    %481 = vmatpush2.bf16.msra.mxu0 0
    %482 = vmatprep.subr.bf16.mxu0 0
    %483 = vmatpush2.bf16.msra.mxu0 0
    %484 = vmatprep.mubr.bf16.mxu0 0
    %485 = vmatmul.mubr.bf16.gmra.mxu0 %v119
    %v486 = vpop.f32.mrf.mxu0
    %v487 = vadd.f32 %v438, %v486
    %v488 = vpop.f32.mrf.mxu0
    %v489 = vpop.f32.mrf.mxu0
    %v490 = vadd.f32 %v438, %v489
    %v491 = vpop.f32.mrf.mxu0
    %492 = vdwg.mxu0
    %v493 = vpack.c.bf16 %v490, %v487
    %s494 = scalar_lea.vmem %s3, 32
    %v495 = vld [vmem:[%s494] sm:$0xf]
    %v496 = vld [vmem:[%s494 + $0x4] sm:$0xf]
    %v497 = vld [vmem:[%s494 + $0x8] sm:$0xf]
    %v498 = vld [vmem:[%s494 + $0xc] sm:$0xf]
    %s499 = scalar_lea.vmem %s4, 2
    %v500 = vld [vmem:[%s499] sm:$0x1]
    %v502 = vlaneseq
    %v503 = vshrl.u32 %v502, 7
    %v504 = vsub.s32 0, %v503
    %v505 = vrot.slane %v500, %v504
    %v511 = vunpack.c.l.b16 %v495
    %v512 = vunpack.c.l.b16 %v496
    %v513 = vunpack.c.l.b16 %v497
    %v514 = vunpack.c.l.b16 %v498
    %v515 = vpack.c.b16 %v512, %v511
    %v516 = vpack.c.b16 %v514, %v513
    %519 = vmatprep.subr.bf16.mxu0 0
    %520 = vmatpush1.bf16.msra.mxu0 0
    %521 = vmatprep.subr.bf16.mxu0 0
    %522 = vmatpush1.bf16.msra.mxu0 0
    %523 = vmatprep.subr.bf16.mxu0 0
    %524 = vmatpush1.bf16.msra.mxu0 0
    %525 = vmatprep.subr.bf16.mxu0 0
    %526 = vmatpush1.bf16.msra.mxu0 0
    %527 = vmatprep.subr.bf16.mxu0 0
    %528 = vmatpush1.bf16.msra.mxu0 0
    %529 = vmatprep.subr.bf16.mxu0 0
    %530 = vmatpush1.bf16.msra.mxu0 0
    %531 = vmatprep.subr.bf16.mxu0 0
    %532 = vmatpush1.bf16.msra.mxu0 %v516
    %533 = vmatprep.subr.bf16.mxu0 0
    %534 = vmatpush1.bf16.msra.mxu0 %v515
    %535 = vmatprep.subr.bf16.mxu0 0
    %536 = vmatpush2.bf16.msra.mxu0 0
    %537 = vmatprep.subr.bf16.mxu0 0
    %538 = vmatpush2.bf16.msra.mxu0 0
    %539 = vmatprep.subr.bf16.mxu0 0
    %540 = vmatpush2.bf16.msra.mxu0 0
    %541 = vmatprep.subr.bf16.mxu0 0
    %542 = vmatpush2.bf16.msra.mxu0 0
    %543 = vmatprep.subr.bf16.mxu0 0
    %544 = vmatpush2.bf16.msra.mxu0 0
    %545 = vmatprep.subr.bf16.mxu0 0
    %546 = vmatpush2.bf16.msra.mxu0 0
    %547 = vmatprep.subr.bf16.mxu0 0
    %548 = vmatpush2.bf16.msra.mxu0 0
    %549 = vmatprep.subr.bf16.mxu0 0
    %550 = vmatpush2.bf16.msra.mxu0 0
    %551 = vmatprep.mubr.bf16.mxu0 0
    %552 = vmatmul.mubr.bf16.gmra.mxu0 %v119
    %v553 = vpop.f32.mrf.mxu0
    %v554 = vadd.f32 %v505, %v553
    %v555 = vpop.f32.mrf.mxu0
    %v556 = vpop.f32.mrf.mxu0
    %v557 = vadd.f32 %v505, %v556
    %v558 = vpop.f32.mrf.mxu0
    %559 = vdwg.mxu0
    %v560 = vpack.c.bf16 %v557, %v554
    %s561 = scalar_lea.vmem %s5, 32
    %v562 = vld [vmem:[%s561] sm:$0xf]
    %v563 = vld [vmem:[%s561 + $0x4] sm:$0xf]
    %v564 = vld [vmem:[%s561 + $0x8] sm:$0xf]
    %v565 = vld [vmem:[%s561 + $0xc] sm:$0xf]
    %s566 = scalar_lea.vmem %s6, 2
    %v567 = vld [vmem:[%s566] sm:$0x1]
    %v569 = vlaneseq
    %v570 = vshrl.u32 %v569, 7
    %v571 = vsub.s32 0, %v570
    %v572 = vrot.slane %v567, %v571
    %v578 = vunpack.c.l.b16 %v562
    %v579 = vunpack.c.l.b16 %v563
    %v580 = vunpack.c.l.b16 %v564
    %v581 = vunpack.c.l.b16 %v565
    %v582 = vpack.c.b16 %v579, %v578
    %v583 = vpack.c.b16 %v581, %v580
    %586 = vmatprep.subr.bf16.mxu0 0
    %587 = vmatpush1.bf16.msra.mxu0 0
    %588 = vmatprep.subr.bf16.mxu0 0
    %589 = vmatpush1.bf16.msra.mxu0 0
    %590 = vmatprep.subr.bf16.mxu0 0
    %591 = vmatpush1.bf16.msra.mxu0 0
    %592 = vmatprep.subr.bf16.mxu0 0
    %593 = vmatpush1.bf16.msra.mxu0 0
    %594 = vmatprep.subr.bf16.mxu0 0
    %595 = vmatpush1.bf16.msra.mxu0 0
    %596 = vmatprep.subr.bf16.mxu0 0
    %597 = vmatpush1.bf16.msra.mxu0 0
    %598 = vmatprep.subr.bf16.mxu0 0
    %599 = vmatpush1.bf16.msra.mxu0 %v583
    %600 = vmatprep.subr.bf16.mxu0 0
    %601 = vmatpush1.bf16.msra.mxu0 %v582
    %602 = vmatprep.subr.bf16.mxu0 0
    %603 = vmatpush2.bf16.msra.mxu0 0
    %604 = vmatprep.subr.bf16.mxu0 0
    %605 = vmatpush2.bf16.msra.mxu0 0
    %606 = vmatprep.subr.bf16.mxu0 0
    %607 = vmatpush2.bf16.msra.mxu0 0
    %608 = vmatprep.subr.bf16.mxu0 0
    %609 = vmatpush2.bf16.msra.mxu0 0
    %610 = vmatprep.subr.bf16.mxu0 0
    %611 = vmatpush2.bf16.msra.mxu0 0
    %612 = vmatprep.subr.bf16.mxu0 0
    %613 = vmatpush2.bf16.msra.mxu0 0
    %614 = vmatprep.subr.bf16.mxu0 0
    %615 = vmatpush2.bf16.msra.mxu0 0
    %616 = vmatprep.subr.bf16.mxu0 0
    %617 = vmatpush2.bf16.msra.mxu0 0
    %618 = vmatprep.mubr.bf16.mxu0 0
    %619 = vmatmul.mubr.bf16.gmra.mxu0 %v119
    %v620 = vpop.f32.mrf.mxu0
    %v621 = vadd.f32 %v572, %v620
    %v622 = vpop.f32.mrf.mxu0
    %v623 = vpop.f32.mrf.mxu0
    %v624 = vadd.f32 %v572, %v623
    %v625 = vpop.f32.mrf.mxu0
    %626 = vdwg.mxu0
    %v627 = vpack.c.bf16 %v624, %v621
    %s628 = scalar_lea.vmem %s7, 32
    %v629 = vld [vmem:[%s628] sm:$0xf]
    %v630 = vld [vmem:[%s628 + $0x4] sm:$0xf]
    %v631 = vld [vmem:[%s628 + $0x8] sm:$0xf]
    %v632 = vld [vmem:[%s628 + $0xc] sm:$0xf]
    %s633 = scalar_lea.vmem %s8, 2
    %v634 = vld [vmem:[%s633] sm:$0x1]
    %v636 = vlaneseq
    %v637 = vshrl.u32 %v636, 7
    %v638 = vsub.s32 0, %v637
    %v639 = vrot.slane %v634, %v638
    %v645 = vunpack.c.l.b16 %v629
    %v646 = vunpack.c.l.b16 %v630
    %v647 = vunpack.c.l.b16 %v631
    %v648 = vunpack.c.l.b16 %v632
    %v649 = vpack.c.b16 %v646, %v645
    %v650 = vpack.c.b16 %v648, %v647
    %653 = vmatprep.subr.bf16.mxu0 0
    %654 = vmatpush1.bf16.msra.mxu0 0
    %655 = vmatprep.subr.bf16.mxu0 0
    %656 = vmatpush1.bf16.msra.mxu0 0
    %657 = vmatprep.subr.bf16.mxu0 0
    %658 = vmatpush1.bf16.msra.mxu0 0
    %659 = vmatprep.subr.bf16.mxu0 0
    %660 = vmatpush1.bf16.msra.mxu0 0
    %661 = vmatprep.subr.bf16.mxu0 0
    %662 = vmatpush1.bf16.msra.mxu0 0
    %663 = vmatprep.subr.bf16.mxu0 0
    %664 = vmatpush1.bf16.msra.mxu0 0
    %665 = vmatprep.subr.bf16.mxu0 0
    %666 = vmatpush1.bf16.msra.mxu0 %v650
    %667 = vmatprep.subr.bf16.mxu0 0
    %668 = vmatpush1.bf16.msra.mxu0 %v649
    %669 = vmatprep.subr.bf16.mxu0 0
    %670 = vmatpush2.bf16.msra.mxu0 0
    %671 = vmatprep.subr.bf16.mxu0 0
    %672 = vmatpush2.bf16.msra.mxu0 0
    %673 = vmatprep.subr.bf16.mxu0 0
    %674 = vmatpush2.bf16.msra.mxu0 0
    %675 = vmatprep.subr.bf16.mxu0 0
    %676 = vmatpush2.bf16.msra.mxu0 0
    %677 = vmatprep.subr.bf16.mxu0 0
    %678 = vmatpush2.bf16.msra.mxu0 0
    %679 = vmatprep.subr.bf16.mxu0 0
    %680 = vmatpush2.bf16.msra.mxu0 0
    %681 = vmatprep.subr.bf16.mxu0 0
    %682 = vmatpush2.bf16.msra.mxu0 0
    %683 = vmatprep.subr.bf16.mxu0 0
    %684 = vmatpush2.bf16.msra.mxu0 0
    %685 = vmatprep.mubr.bf16.mxu0 0
    %686 = vmatmul.mubr.bf16.gmra.mxu0 %v119
    %v687 = vpop.f32.mrf.mxu0
    %v688 = vadd.f32 %v639, %v687
    %v689 = vpop.f32.mrf.mxu0
    %v690 = vpop.f32.mrf.mxu0
    %v691 = vadd.f32 %v639, %v690
    %v692 = vpop.f32.mrf.mxu0
    %693 = vdwg.mxu0
    %v694 = vpack.c.bf16 %v691, %v688
    %s695 = scalar_lea.vmem %s3, 48
    %v696 = vld [vmem:[%s695] sm:$0xf]
    %v697 = vld [vmem:[%s695 + $0x4] sm:$0xf]
    %v698 = vld [vmem:[%s695 + $0x8] sm:$0xf]
    %v699 = vld [vmem:[%s695 + $0xc] sm:$0xf]
    %s700 = scalar_lea.vmem %s4, 3
    %v701 = vld [vmem:[%s700] sm:$0x1]
    %v703 = vlaneseq
    %v704 = vshrl.u32 %v703, 7
    %v705 = vsub.s32 0, %v704
    %v706 = vrot.slane %v701, %v705
    %v712 = vunpack.c.l.b16 %v696
    %v713 = vunpack.c.l.b16 %v697
    %v714 = vunpack.c.l.b16 %v698
    %v715 = vunpack.c.l.b16 %v699
    %v716 = vpack.c.b16 %v713, %v712
    %v717 = vpack.c.b16 %v715, %v714
    %720 = vmatprep.subr.bf16.mxu0 0
    %721 = vmatpush1.bf16.msra.mxu0 0
    %722 = vmatprep.subr.bf16.mxu0 0
    %723 = vmatpush1.bf16.msra.mxu0 0
    %724 = vmatprep.subr.bf16.mxu0 0
    %725 = vmatpush1.bf16.msra.mxu0 0
    %726 = vmatprep.subr.bf16.mxu0 0
    %727 = vmatpush1.bf16.msra.mxu0 0
    %728 = vmatprep.subr.bf16.mxu0 0
    %729 = vmatpush1.bf16.msra.mxu0 0
    %730 = vmatprep.subr.bf16.mxu0 0
    %731 = vmatpush1.bf16.msra.mxu0 0
    %732 = vmatprep.subr.bf16.mxu0 0
    %733 = vmatpush1.bf16.msra.mxu0 %v717
    %734 = vmatprep.subr.bf16.mxu0 0
    %735 = vmatpush1.bf16.msra.mxu0 %v716
    %736 = vmatprep.subr.bf16.mxu0 0
    %737 = vmatpush2.bf16.msra.mxu0 0
    %738 = vmatprep.subr.bf16.mxu0 0
    %739 = vmatpush2.bf16.msra.mxu0 0
    %740 = vmatprep.subr.bf16.mxu0 0
    %741 = vmatpush2.bf16.msra.mxu0 0
    %742 = vmatprep.subr.bf16.mxu0 0
    %743 = vmatpush2.bf16.msra.mxu0 0
    %744 = vmatprep.subr.bf16.mxu0 0
    %745 = vmatpush2.bf16.msra.mxu0 0
    %746 = vmatprep.subr.bf16.mxu0 0
    %747 = vmatpush2.bf16.msra.mxu0 0
    %748 = vmatprep.subr.bf16.mxu0 0
    %749 = vmatpush2.bf16.msra.mxu0 0
    %750 = vmatprep.subr.bf16.mxu0 0
    %751 = vmatpush2.bf16.msra.mxu0 0
    %752 = vmatprep.mubr.bf16.mxu0 0
    %753 = vmatmul.mubr.bf16.gmra.mxu0 %v119
    %v754 = vpop.f32.mrf.mxu0
    %v755 = vadd.f32 %v706, %v754
    %v756 = vpop.f32.mrf.mxu0
    %v757 = vpop.f32.mrf.mxu0
    %v758 = vadd.f32 %v706, %v757
    %v759 = vpop.f32.mrf.mxu0
    %760 = vdwg.mxu0
    %v761 = vpack.c.bf16 %v758, %v755
    %s762 = scalar_lea.vmem %s5, 48
    %v763 = vld [vmem:[%s762] sm:$0xf]
    %v764 = vld [vmem:[%s762 + $0x4] sm:$0xf]
    %v765 = vld [vmem:[%s762 + $0x8] sm:$0xf]
    %v766 = vld [vmem:[%s762 + $0xc] sm:$0xf]
    %s767 = scalar_lea.vmem %s6, 3
    %v768 = vld [vmem:[%s767] sm:$0x1]
    %v770 = vlaneseq
    %v771 = vshrl.u32 %v770, 7
    %v772 = vsub.s32 0, %v771
    %v773 = vrot.slane %v768, %v772
    %v779 = vunpack.c.l.b16 %v763
    %v780 = vunpack.c.l.b16 %v764
    %v781 = vunpack.c.l.b16 %v765
    %v782 = vunpack.c.l.b16 %v766
    %v783 = vpack.c.b16 %v780, %v779
    %v784 = vpack.c.b16 %v782, %v781
    %787 = vmatprep.subr.bf16.mxu0 0
    %788 = vmatpush1.bf16.msra.mxu0 0
    %789 = vmatprep.subr.bf16.mxu0 0
    %790 = vmatpush1.bf16.msra.mxu0 0
    %791 = vmatprep.subr.bf16.mxu0 0
    %792 = vmatpush1.bf16.msra.mxu0 0
    %793 = vmatprep.subr.bf16.mxu0 0
    %794 = vmatpush1.bf16.msra.mxu0 0
    %795 = vmatprep.subr.bf16.mxu0 0
    %796 = vmatpush1.bf16.msra.mxu0 0
    %797 = vmatprep.subr.bf16.mxu0 0
    %798 = vmatpush1.bf16.msra.mxu0 0
    %799 = vmatprep.subr.bf16.mxu0 0
    %800 = vmatpush1.bf16.msra.mxu0 %v784
    %801 = vmatprep.subr.bf16.mxu0 0
    %802 = vmatpush1.bf16.msra.mxu0 %v783
    %803 = vmatprep.subr.bf16.mxu0 0
    %804 = vmatpush2.bf16.msra.mxu0 0
    %805 = vmatprep.subr.bf16.mxu0 0
    %806 = vmatpush2.bf16.msra.mxu0 0
    %807 = vmatprep.subr.bf16.mxu0 0
    %808 = vmatpush2.bf16.msra.mxu0 0
    %809 = vmatprep.subr.bf16.mxu0 0
    %810 = vmatpush2.bf16.msra.mxu0 0
    %811 = vmatprep.subr.bf16.mxu0 0
    %812 = vmatpush2.bf16.msra.mxu0 0
    %813 = vmatprep.subr.bf16.mxu0 0
    %814 = vmatpush2.bf16.msra.mxu0 0
    %815 = vmatprep.subr.bf16.mxu0 0
    %816 = vmatpush2.bf16.msra.mxu0 0
    %817 = vmatprep.subr.bf16.mxu0 0
    %818 = vmatpush2.bf16.msra.mxu0 0
    %819 = vmatprep.mubr.bf16.mxu0 0
    %820 = vmatmul.mubr.bf16.gmra.mxu0 %v119
    %v821 = vpop.f32.mrf.mxu0
    %v822 = vadd.f32 %v773, %v821
    %v823 = vpop.f32.mrf.mxu0
    %v824 = vpop.f32.mrf.mxu0
    %v825 = vadd.f32 %v773, %v824
    %v826 = vpop.f32.mrf.mxu0
    %827 = vdwg.mxu0
    %v828 = vpack.c.bf16 %v825, %v822
    %s829 = scalar_lea.vmem %s7, 48
    %v830 = vld [vmem:[%s829] sm:$0xf]
    %v831 = vld [vmem:[%s829 + $0x4] sm:$0xf]
    %v832 = vld [vmem:[%s829 + $0x8] sm:$0xf]
    %v833 = vld [vmem:[%s829 + $0xc] sm:$0xf]
    %s834 = scalar_lea.vmem %s8, 3
    %v835 = vld [vmem:[%s834] sm:$0x1]
    %v837 = vlaneseq
    %v838 = vshrl.u32 %v837, 7
    %v839 = vsub.s32 0, %v838
    %v840 = vrot.slane %v835, %v839
    %v846 = vunpack.c.l.b16 %v830
    %v847 = vunpack.c.l.b16 %v831
    %v848 = vunpack.c.l.b16 %v832
    %v849 = vunpack.c.l.b16 %v833
    %v850 = vpack.c.b16 %v847, %v846
    %v851 = vpack.c.b16 %v849, %v848
    %854 = vmatprep.subr.bf16.mxu0 0
    %855 = vmatpush1.bf16.msra.mxu0 0
    %856 = vmatprep.subr.bf16.mxu0 0
    %857 = vmatpush1.bf16.msra.mxu0 0
    %858 = vmatprep.subr.bf16.mxu0 0
    %859 = vmatpush1.bf16.msra.mxu0 0
    %860 = vmatprep.subr.bf16.mxu0 0
    %861 = vmatpush1.bf16.msra.mxu0 0
    %862 = vmatprep.subr.bf16.mxu0 0
    %863 = vmatpush1.bf16.msra.mxu0 0
    %864 = vmatprep.subr.bf16.mxu0 0
    %865 = vmatpush1.bf16.msra.mxu0 0
    %866 = vmatprep.subr.bf16.mxu0 0
    %867 = vmatpush1.bf16.msra.mxu0 %v851
    %868 = vmatprep.subr.bf16.mxu0 0
    %869 = vmatpush1.bf16.msra.mxu0 %v850
    %870 = vmatprep.subr.bf16.mxu0 0
    %871 = vmatpush2.bf16.msra.mxu0 0
    %872 = vmatprep.subr.bf16.mxu0 0
    %873 = vmatpush2.bf16.msra.mxu0 0
    %874 = vmatprep.subr.bf16.mxu0 0
    %875 = vmatpush2.bf16.msra.mxu0 0
    %876 = vmatprep.subr.bf16.mxu0 0
    %877 = vmatpush2.bf16.msra.mxu0 0
    %878 = vmatprep.subr.bf16.mxu0 0
    %879 = vmatpush2.bf16.msra.mxu0 0
    %880 = vmatprep.subr.bf16.mxu0 0
    %881 = vmatpush2.bf16.msra.mxu0 0
    %882 = vmatprep.subr.bf16.mxu0 0
    %883 = vmatpush2.bf16.msra.mxu0 0
    %884 = vmatprep.subr.bf16.mxu0 0
    %885 = vmatpush2.bf16.msra.mxu0 0
    %886 = vmatprep.mubr.bf16.mxu0 0
    %887 = vmatmul.mubr.bf16.gmra.mxu0 %v119
    %v888 = vpop.f32.mrf.mxu0
    %v889 = vadd.f32 %v840, %v888
    %v890 = vpop.f32.mrf.mxu0
    %v891 = vpop.f32.mrf.mxu0
    %v892 = vadd.f32 %v840, %v891
    %v893 = vpop.f32.mrf.mxu0
    %894 = vdwg.mxu0
    %v895 = vpack.c.bf16 %v892, %v889
    %v897 = vlaneseq
    %v898 = vshrl.u32 %v897, 7
    %v899 = vsub.s32 0, %v898
    %v900 = vrot.slane %v89, %v899
    %v902 = vadd.f32 %v40, %v900
    %vm903 = vcmask 64512
    %v905 = vsel %vm903, %v162, 0
    %v908 = vsel %vm903, %v227, 0
    %910 = vmatprep.subr.bf16.mxu0 0
    %911 = vmatpush1.bf16.xpose.msra.mxu0 0
    %912 = vmatprep.subr.bf16.mxu0 0
    %913 = vmatpush1.bf16.xpose.msra.mxu0 0
    %914 = vmatprep.subr.bf16.mxu0 0
    %915 = vmatpush1.bf16.xpose.msra.mxu0 0
    %916 = vmatprep.subr.bf16.mxu0 0
    %917 = vmatpush1.bf16.xpose.msra.mxu0 0
    %918 = vmatprep.subr.bf16.mxu0 0
    %919 = vmatpush1.bf16.xpose.msra.mxu0 0
    %920 = vmatprep.subr.bf16.mxu0 0
    %921 = vmatpush1.bf16.xpose.msra.mxu0 0
    %922 = vmatprep.subr.bf16.mxu0 0
    %923 = vmatpush1.bf16.xpose.msra.mxu0 0
    %924 = vmatprep.subr.bf16.mxu0 0
    %925 = vmatpush1.bf16.xpose.msra.mxu0 %v908
    %926 = vmatprep.subr.bf16.mxu0 0
    %927 = vmatpush2.bf16.xpose.msra.mxu0 0
    %928 = vmatprep.subr.bf16.mxu0 0
    %929 = vmatpush2.bf16.xpose.msra.mxu0 0
    %930 = vmatprep.subr.bf16.mxu0 0
    %931 = vmatpush2.bf16.xpose.msra.mxu0 0
    %932 = vmatprep.subr.bf16.mxu0 0
    %933 = vmatpush2.bf16.xpose.msra.mxu0 0
    %934 = vmatprep.subr.bf16.mxu0 0
    %935 = vmatpush2.bf16.xpose.msra.mxu0 0
    %936 = vmatprep.subr.bf16.mxu0 0
    %937 = vmatpush2.bf16.xpose.msra.mxu0 0
    %938 = vmatprep.subr.bf16.mxu0 0
    %939 = vmatpush2.bf16.xpose.msra.mxu0 0
    %940 = vmatprep.subr.bf16.mxu0 0
    %941 = vmatpush2.bf16.xpose.msra.mxu0 0
    %942 = vmatprep.mubr.bf16.mxu0 0
    %943 = vmatmul.mubr.bf16.gmra.mxu0 %v905
    %v944 = vpop.f32.mrf.mxu0
    %v945 = vadd.f32 0.0, %v944
    %v946 = vpop.f32.mrf.mxu0
    %v947 = vpop.f32.mrf.mxu0
    %v948 = vpop.f32.mrf.mxu0
    %949 = vdwg.mxu0
    %v950 = vmul.f32 %v945, 0.35355338
    %v951 = vsel %vm94, %v950, -1e+30
    %v952 = vsel %vm903, %v951, -inf
    %953 = vmax.xlane.f32.xlu0 %v952
    %v954 = vpop.xlane.xlu0 %953
    %v955 = vsub.f32 %v951, %v954
    %v956 = vmul.f32 %v955, 1.442695
    %v957 = vpow.pop %v956
    %v958 = vsel %vm903, %v957, 0.0
    %959 = vadd.xlane.f32.xlu0 %v958
    %v960 = vpop.xlane.xlu0 %959
    %v961 = vpack.c.bf16 %v957, %v957
    %v963 = vsel %vm903, %v961, 0
    %vm965 = vcmask 1043456
    %v967 = vsel %vm965, %v292, 0
    %969 = vmatprep.subr.bf16.mxu0 0
    %970 = vmatpush1.bf16.msra.mxu0 0
    %971 = vmatprep.subr.bf16.mxu0 0
    %972 = vmatpush1.bf16.msra.mxu0 0
    %973 = vmatprep.subr.bf16.mxu0 0
    %974 = vmatpush1.bf16.msra.mxu0 0
    %975 = vmatprep.subr.bf16.mxu0 0
    %976 = vmatpush1.bf16.msra.mxu0 0
    %977 = vmatprep.subr.bf16.mxu0 0
    %978 = vmatpush1.bf16.msra.mxu0 0
    %979 = vmatprep.subr.bf16.mxu0 0
    %980 = vmatpush1.bf16.msra.mxu0 0
    %981 = vmatprep.subr.bf16.mxu0 0
    %982 = vmatpush1.bf16.msra.mxu0 0
    %983 = vmatprep.subr.bf16.mxu0 0
    %984 = vmatpush1.bf16.msra.mxu0 %v967
    %985 = vmatprep.subr.bf16.mxu0 0
    %986 = vmatpush2.bf16.msra.mxu0 0
    %987 = vmatprep.subr.bf16.mxu0 0
    %988 = vmatpush2.bf16.msra.mxu0 0
    %989 = vmatprep.subr.bf16.mxu0 0
    %990 = vmatpush2.bf16.msra.mxu0 0
    %991 = vmatprep.subr.bf16.mxu0 0
    %992 = vmatpush2.bf16.msra.mxu0 0
    %993 = vmatprep.subr.bf16.mxu0 0
    %994 = vmatpush2.bf16.msra.mxu0 0
    %995 = vmatprep.subr.bf16.mxu0 0
    %996 = vmatpush2.bf16.msra.mxu0 0
    %997 = vmatprep.subr.bf16.mxu0 0
    %998 = vmatpush2.bf16.msra.mxu0 0
    %999 = vmatprep.subr.bf16.mxu0 0
    %1000 = vmatpush2.bf16.msra.mxu0 0
    %1001 = vmatprep.mubr.bf16.mxu0 0
    %1002 = vmatmul.mubr.bf16.gmra.mxu0 %v963
    %v1003 = vpop.f32.mrf.mxu0
    %v1004 = vadd.f32 0.0, %v1003
    %v1005 = vpop.f32.mrf.mxu0
    %v1006 = vpop.f32.mrf.mxu0
    %v1007 = vpop.f32.mrf.mxu0
    %1008 = vdwg.mxu0
    %v1009 = vrcp.pop %v960
    %v1010 = vmul.f32 %v1004, %v1009
    %v1011 = vpack.c.bf16 %v1010, %v1010
    %v1012 = vld [vmem:[%s9] sm:$0xf]
    %v1014 = vsel %vm903, %v1011, 0
    %v1017 = vsel %vm965, %v1012, 0
    %1019 = vmatprep.subr.bf16.mxu0 0
    %1020 = vmatpush1.bf16.msra.mxu0 0
    %1021 = vmatprep.subr.bf16.mxu0 0
    %1022 = vmatpush1.bf16.msra.mxu0 0
    %1023 = vmatprep.subr.bf16.mxu0 0
    %1024 = vmatpush1.bf16.msra.mxu0 0
    %1025 = vmatprep.subr.bf16.mxu0 0
    %1026 = vmatpush1.bf16.msra.mxu0 0
    %1027 = vmatprep.subr.bf16.mxu0 0
    %1028 = vmatpush1.bf16.msra.mxu0 0
    %1029 = vmatprep.subr.bf16.mxu0 0
    %1030 = vmatpush1.bf16.msra.mxu0 0
    %1031 = vmatprep.subr.bf16.mxu0 0
    %1032 = vmatpush1.bf16.msra.mxu0 0
    %1033 = vmatprep.subr.bf16.mxu0 0
    %1034 = vmatpush1.bf16.msra.mxu0 %v1017
    %1035 = vmatprep.subr.bf16.mxu0 0
    %1036 = vmatpush2.bf16.msra.mxu0 0
    %1037 = vmatprep.subr.bf16.mxu0 0
    %1038 = vmatpush2.bf16.msra.mxu0 0
    %1039 = vmatprep.subr.bf16.mxu0 0
    %1040 = vmatpush2.bf16.msra.mxu0 0
    %1041 = vmatprep.subr.bf16.mxu0 0
    %1042 = vmatpush2.bf16.msra.mxu0 0
    %1043 = vmatprep.subr.bf16.mxu0 0
    %1044 = vmatpush2.bf16.msra.mxu0 0
    %1045 = vmatprep.subr.bf16.mxu0 0
    %1046 = vmatpush2.bf16.msra.mxu0 0
    %1047 = vmatprep.subr.bf16.mxu0 0
    %1048 = vmatpush2.bf16.msra.mxu0 0
    %1049 = vmatprep.subr.bf16.mxu0 0
    %1050 = vmatpush2.bf16.msra.mxu0 0
    %1051 = vmatprep.mubr.bf16.mxu0 0
    %1052 = vmatmul.mubr.bf16.gmra.mxu0 %v1014
    %v1053 = vpop.f32.mrf.mxu0
    %v1054 = vadd.f32 0.0, %v1053
    %v1055 = vpop.f32.mrf.mxu0
    %v1056 = vpop.f32.mrf.mxu0
    %v1057 = vpop.f32.mrf.mxu0
    %1058 = vdwg.mxu0
    %v1059 = vadd.f32 %v902, %v1054
    %v1061 = vsel %vm903, %v359, 0
    %v1064 = vsel %vm903, %v426, 0
    %1066 = vmatprep.subr.bf16.mxu0 0
    %1067 = vmatpush1.bf16.xpose.msra.mxu0 0
    %1068 = vmatprep.subr.bf16.mxu0 0
    %1069 = vmatpush1.bf16.xpose.msra.mxu0 0
    %1070 = vmatprep.subr.bf16.mxu0 0
    %1071 = vmatpush1.bf16.xpose.msra.mxu0 0
    %1072 = vmatprep.subr.bf16.mxu0 0
    %1073 = vmatpush1.bf16.xpose.msra.mxu0 0
    %1074 = vmatprep.subr.bf16.mxu0 0
    %1075 = vmatpush1.bf16.xpose.msra.mxu0 0
    %1076 = vmatprep.subr.bf16.mxu0 0
    %1077 = vmatpush1.bf16.xpose.msra.mxu0 0
    %1078 = vmatprep.subr.bf16.mxu0 0
    %1079 = vmatpush1.bf16.xpose.msra.mxu0 0
    %1080 = vmatprep.subr.bf16.mxu0 0
    %1081 = vmatpush1.bf16.xpose.msra.mxu0 %v1064
    %1082 = vmatprep.subr.bf16.mxu0 0
    %1083 = vmatpush2.bf16.xpose.msra.mxu0 0
    %1084 = vmatprep.subr.bf16.mxu0 0
    %1085 = vmatpush2.bf16.xpose.msra.mxu0 0
    %1086 = vmatprep.subr.bf16.mxu0 0
    %1087 = vmatpush2.bf16.xpose.msra.mxu0 0
    %1088 = vmatprep.subr.bf16.mxu0 0
    %1089 = vmatpush2.bf16.xpose.msra.mxu0 0
    %1090 = vmatprep.subr.bf16.mxu0 0
    %1091 = vmatpush2.bf16.xpose.msra.mxu0 0
    %1092 = vmatprep.subr.bf16.mxu0 0
    %1093 = vmatpush2.bf16.xpose.msra.mxu0 0
    %1094 = vmatprep.subr.bf16.mxu0 0
    %1095 = vmatpush2.bf16.xpose.msra.mxu0 0
    %1096 = vmatprep.subr.bf16.mxu0 0
    %1097 = vmatpush2.bf16.xpose.msra.mxu0 0
    %1098 = vmatprep.mubr.bf16.mxu0 0
    %1099 = vmatmul.mubr.bf16.gmra.mxu0 %v1061
    %v1100 = vpop.f32.mrf.mxu0
    %v1101 = vadd.f32 0.0, %v1100
    %v1102 = vpop.f32.mrf.mxu0
    %v1103 = vpop.f32.mrf.mxu0
    %v1104 = vpop.f32.mrf.mxu0
    %1105 = vdwg.mxu0
    %v1106 = vmul.f32 %v1101, 0.35355338
    %v1107 = vsel %vm94, %v1106, -1e+30
    %v1108 = vsel %vm903, %v1107, -inf
    %1109 = vmax.xlane.f32.xlu0 %v1108
    %v1110 = vpop.xlane.xlu0 %1109
    %v1111 = vsub.f32 %v1107, %v1110
    %v1112 = vmul.f32 %v1111, 1.442695
    %v1113 = vpow.pop %v1112
    %v1114 = vsel %vm903, %v1113, 0.0
    %1115 = vadd.xlane.f32.xlu0 %v1114
    %v1116 = vpop.xlane.xlu0 %1115
    %v1117 = vpack.c.bf16 %v1113, %v1113
    %v1119 = vsel %vm903, %v1117, 0
    %v1122 = vsel %vm965, %v493, 0
    %1124 = vmatprep.subr.bf16.mxu0 0
    %1125 = vmatpush1.bf16.msra.mxu0 0
    %1126 = vmatprep.subr.bf16.mxu0 0
    %1127 = vmatpush1.bf16.msra.mxu0 0
    %1128 = vmatprep.subr.bf16.mxu0 0
    %1129 = vmatpush1.bf16.msra.mxu0 0
    %1130 = vmatprep.subr.bf16.mxu0 0
    %1131 = vmatpush1.bf16.msra.mxu0 0
    %1132 = vmatprep.subr.bf16.mxu0 0
    %1133 = vmatpush1.bf16.msra.mxu0 0
    %1134 = vmatprep.subr.bf16.mxu0 0
    %1135 = vmatpush1.bf16.msra.mxu0 0
    %1136 = vmatprep.subr.bf16.mxu0 0
    %1137 = vmatpush1.bf16.msra.mxu0 0
    %1138 = vmatprep.subr.bf16.mxu0 0
    %1139 = vmatpush1.bf16.msra.mxu0 %v1122
    %1140 = vmatprep.subr.bf16.mxu0 0
    %1141 = vmatpush2.bf16.msra.mxu0 0
    %1142 = vmatprep.subr.bf16.mxu0 0
    %1143 = vmatpush2.bf16.msra.mxu0 0
    %1144 = vmatprep.subr.bf16.mxu0 0
    %1145 = vmatpush2.bf16.msra.mxu0 0
    %1146 = vmatprep.subr.bf16.mxu0 0
    %1147 = vmatpush2.bf16.msra.mxu0 0
    %1148 = vmatprep.subr.bf16.mxu0 0
    %1149 = vmatpush2.bf16.msra.mxu0 0
    %1150 = vmatprep.subr.bf16.mxu0 0
    %1151 = vmatpush2.bf16.msra.mxu0 0
    %1152 = vmatprep.subr.bf16.mxu0 0
    %1153 = vmatpush2.bf16.msra.mxu0 0
    %1154 = vmatprep.subr.bf16.mxu0 0
    %1155 = vmatpush2.bf16.msra.mxu0 0
    %1156 = vmatprep.mubr.bf16.mxu0 0
    %1157 = vmatmul.mubr.bf16.gmra.mxu0 %v1119
    %v1158 = vpop.f32.mrf.mxu0
    %v1159 = vadd.f32 0.0, %v1158
    %v1160 = vpop.f32.mrf.mxu0
    %v1161 = vpop.f32.mrf.mxu0
    %v1162 = vpop.f32.mrf.mxu0
    %1163 = vdwg.mxu0
    %v1164 = vrcp.pop %v1116
    %v1165 = vmul.f32 %v1159, %v1164
    %v1166 = vpack.c.bf16 %v1165, %v1165
    %s1167 = scalar_lea.vmem %s9, 4
    %v1168 = vld [vmem:[%s1167] sm:$0xf]
    %v1170 = vsel %vm903, %v1166, 0
    %v1173 = vsel %vm965, %v1168, 0
    %1175 = vmatprep.subr.bf16.mxu0 0
    %1176 = vmatpush1.bf16.msra.mxu0 0
    %1177 = vmatprep.subr.bf16.mxu0 0
    %1178 = vmatpush1.bf16.msra.mxu0 0
    %1179 = vmatprep.subr.bf16.mxu0 0
    %1180 = vmatpush1.bf16.msra.mxu0 0
    %1181 = vmatprep.subr.bf16.mxu0 0
    %1182 = vmatpush1.bf16.msra.mxu0 0
    %1183 = vmatprep.subr.bf16.mxu0 0
    %1184 = vmatpush1.bf16.msra.mxu0 0
    %1185 = vmatprep.subr.bf16.mxu0 0
    %1186 = vmatpush1.bf16.msra.mxu0 0
    %1187 = vmatprep.subr.bf16.mxu0 0
    %1188 = vmatpush1.bf16.msra.mxu0 0
    %1189 = vmatprep.subr.bf16.mxu0 0
    %1190 = vmatpush1.bf16.msra.mxu0 %v1173
    %1191 = vmatprep.subr.bf16.mxu0 0
    %1192 = vmatpush2.bf16.msra.mxu0 0
    %1193 = vmatprep.subr.bf16.mxu0 0
    %1194 = vmatpush2.bf16.msra.mxu0 0
    %1195 = vmatprep.subr.bf16.mxu0 0
    %1196 = vmatpush2.bf16.msra.mxu0 0
    %1197 = vmatprep.subr.bf16.mxu0 0
    %1198 = vmatpush2.bf16.msra.mxu0 0
    %1199 = vmatprep.subr.bf16.mxu0 0
    %1200 = vmatpush2.bf16.msra.mxu0 0
    %1201 = vmatprep.subr.bf16.mxu0 0
    %1202 = vmatpush2.bf16.msra.mxu0 0
    %1203 = vmatprep.subr.bf16.mxu0 0
    %1204 = vmatpush2.bf16.msra.mxu0 0
    %1205 = vmatprep.subr.bf16.mxu0 0
    %1206 = vmatpush2.bf16.msra.mxu0 0
    %1207 = vmatprep.mubr.bf16.mxu0 0
    %1208 = vmatmul.mubr.bf16.gmra.mxu0 %v1170
    %v1209 = vpop.f32.mrf.mxu0
    %v1210 = vadd.f32 0.0, %v1209
    %v1211 = vpop.f32.mrf.mxu0
    %v1212 = vpop.f32.mrf.mxu0
    %v1213 = vpop.f32.mrf.mxu0
    %1214 = vdwg.mxu0
    %v1215 = vadd.f32 %v1059, %v1210
    %v1217 = vsel %vm903, %v560, 0
    %v1220 = vsel %vm903, %v627, 0
    %1222 = vmatprep.subr.bf16.mxu0 0
    %1223 = vmatpush1.bf16.xpose.msra.mxu0 0
    %1224 = vmatprep.subr.bf16.mxu0 0
    %1225 = vmatpush1.bf16.xpose.msra.mxu0 0
    %1226 = vmatprep.subr.bf16.mxu0 0
    %1227 = vmatpush1.bf16.xpose.msra.mxu0 0
    %1228 = vmatprep.subr.bf16.mxu0 0
    %1229 = vmatpush1.bf16.xpose.msra.mxu0 0
    %1230 = vmatprep.subr.bf16.mxu0 0
    %1231 = vmatpush1.bf16.xpose.msra.mxu0 0
    %1232 = vmatprep.subr.bf16.mxu0 0
    %1233 = vmatpush1.bf16.xpose.msra.mxu0 0
    %1234 = vmatprep.subr.bf16.mxu0 0
    %1235 = vmatpush1.bf16.xpose.msra.mxu0 0
    %1236 = vmatprep.subr.bf16.mxu0 0
    %1237 = vmatpush1.bf16.xpose.msra.mxu0 %v1220
    %1238 = vmatprep.subr.bf16.mxu0 0
    %1239 = vmatpush2.bf16.xpose.msra.mxu0 0
    %1240 = vmatprep.subr.bf16.mxu0 0
    %1241 = vmatpush2.bf16.xpose.msra.mxu0 0
    %1242 = vmatprep.subr.bf16.mxu0 0
    %1243 = vmatpush2.bf16.xpose.msra.mxu0 0
    %1244 = vmatprep.subr.bf16.mxu0 0
    %1245 = vmatpush2.bf16.xpose.msra.mxu0 0
    %1246 = vmatprep.subr.bf16.mxu0 0
    %1247 = vmatpush2.bf16.xpose.msra.mxu0 0
    %1248 = vmatprep.subr.bf16.mxu0 0
    %1249 = vmatpush2.bf16.xpose.msra.mxu0 0
    %1250 = vmatprep.subr.bf16.mxu0 0
    %1251 = vmatpush2.bf16.xpose.msra.mxu0 0
    %1252 = vmatprep.subr.bf16.mxu0 0
    %1253 = vmatpush2.bf16.xpose.msra.mxu0 0
    %1254 = vmatprep.mubr.bf16.mxu0 0
    %1255 = vmatmul.mubr.bf16.gmra.mxu0 %v1217
    %v1256 = vpop.f32.mrf.mxu0
    %v1257 = vadd.f32 0.0, %v1256
    %v1258 = vpop.f32.mrf.mxu0
    %v1259 = vpop.f32.mrf.mxu0
    %v1260 = vpop.f32.mrf.mxu0
    %1261 = vdwg.mxu0
    %v1262 = vmul.f32 %v1257, 0.35355338
    %v1263 = vsel %vm94, %v1262, -1e+30
    %v1264 = vsel %vm903, %v1263, -inf
    %1265 = vmax.xlane.f32.xlu0 %v1264
    %v1266 = vpop.xlane.xlu0 %1265
    %v1267 = vsub.f32 %v1263, %v1266
    %v1268 = vmul.f32 %v1267, 1.442695
    %v1269 = vpow.pop %v1268
    %v1270 = vsel %vm903, %v1269, 0.0
    %1271 = vadd.xlane.f32.xlu0 %v1270
    %v1272 = vpop.xlane.xlu0 %1271
    %v1273 = vpack.c.bf16 %v1269, %v1269
    %v1275 = vsel %vm903, %v1273, 0
    %v1278 = vsel %vm965, %v694, 0
    %1280 = vmatprep.subr.bf16.mxu0 0
    %1281 = vmatpush1.bf16.msra.mxu0 0
    %1282 = vmatprep.subr.bf16.mxu0 0
    %1283 = vmatpush1.bf16.msra.mxu0 0
    %1284 = vmatprep.subr.bf16.mxu0 0
    %1285 = vmatpush1.bf16.msra.mxu0 0
    %1286 = vmatprep.subr.bf16.mxu0 0
    %1287 = vmatpush1.bf16.msra.mxu0 0
    %1288 = vmatprep.subr.bf16.mxu0 0
    %1289 = vmatpush1.bf16.msra.mxu0 0
    %1290 = vmatprep.subr.bf16.mxu0 0
    %1291 = vmatpush1.bf16.msra.mxu0 0
    %1292 = vmatprep.subr.bf16.mxu0 0
    %1293 = vmatpush1.bf16.msra.mxu0 0
    %1294 = vmatprep.subr.bf16.mxu0 0
    %1295 = vmatpush1.bf16.msra.mxu0 %v1278
    %1296 = vmatprep.subr.bf16.mxu0 0
    %1297 = vmatpush2.bf16.msra.mxu0 0
    %1298 = vmatprep.subr.bf16.mxu0 0
    %1299 = vmatpush2.bf16.msra.mxu0 0
    %1300 = vmatprep.subr.bf16.mxu0 0
    %1301 = vmatpush2.bf16.msra.mxu0 0
    %1302 = vmatprep.subr.bf16.mxu0 0
    %1303 = vmatpush2.bf16.msra.mxu0 0
    %1304 = vmatprep.subr.bf16.mxu0 0
    %1305 = vmatpush2.bf16.msra.mxu0 0
    %1306 = vmatprep.subr.bf16.mxu0 0
    %1307 = vmatpush2.bf16.msra.mxu0 0
    %1308 = vmatprep.subr.bf16.mxu0 0
    %1309 = vmatpush2.bf16.msra.mxu0 0
    %1310 = vmatprep.subr.bf16.mxu0 0
    %1311 = vmatpush2.bf16.msra.mxu0 0
    %1312 = vmatprep.mubr.bf16.mxu0 0
    %1313 = vmatmul.mubr.bf16.gmra.mxu0 %v1275
    %v1314 = vpop.f32.mrf.mxu0
    %v1315 = vadd.f32 0.0, %v1314
    %v1316 = vpop.f32.mrf.mxu0
    %v1317 = vpop.f32.mrf.mxu0
    %v1318 = vpop.f32.mrf.mxu0
    %1319 = vdwg.mxu0
    %v1320 = vrcp.pop %v1272
    %v1321 = vmul.f32 %v1315, %v1320
    %v1322 = vpack.c.bf16 %v1321, %v1321
    %s1323 = scalar_lea.vmem %s9, 8
    %v1324 = vld [vmem:[%s1323] sm:$0xf]
    %v1326 = vsel %vm903, %v1322, 0
    %v1329 = vsel %vm965, %v1324, 0
    %1331 = vmatprep.subr.bf16.mxu0 0
    %1332 = vmatpush1.bf16.msra.mxu0 0
    %1333 = vmatprep.subr.bf16.mxu0 0
    %1334 = vmatpush1.bf16.msra.mxu0 0
    %1335 = vmatprep.subr.bf16.mxu0 0
    %1336 = vmatpush1.bf16.msra.mxu0 0
    %1337 = vmatprep.subr.bf16.mxu0 0
    %1338 = vmatpush1.bf16.msra.mxu0 0
    %1339 = vmatprep.subr.bf16.mxu0 0
    %1340 = vmatpush1.bf16.msra.mxu0 0
    %1341 = vmatprep.subr.bf16.mxu0 0
    %1342 = vmatpush1.bf16.msra.mxu0 0
    %1343 = vmatprep.subr.bf16.mxu0 0
    %1344 = vmatpush1.bf16.msra.mxu0 0
    %1345 = vmatprep.subr.bf16.mxu0 0
    %1346 = vmatpush1.bf16.msra.mxu0 %v1329
    %1347 = vmatprep.subr.bf16.mxu0 0
    %1348 = vmatpush2.bf16.msra.mxu0 0
    %1349 = vmatprep.subr.bf16.mxu0 0
    %1350 = vmatpush2.bf16.msra.mxu0 0
    %1351 = vmatprep.subr.bf16.mxu0 0
    %1352 = vmatpush2.bf16.msra.mxu0 0
    %1353 = vmatprep.subr.bf16.mxu0 0
    %1354 = vmatpush2.bf16.msra.mxu0 0
    %1355 = vmatprep.subr.bf16.mxu0 0
    %1356 = vmatpush2.bf16.msra.mxu0 0
    %1357 = vmatprep.subr.bf16.mxu0 0
    %1358 = vmatpush2.bf16.msra.mxu0 0
    %1359 = vmatprep.subr.bf16.mxu0 0
    %1360 = vmatpush2.bf16.msra.mxu0 0
    %1361 = vmatprep.subr.bf16.mxu0 0
    %1362 = vmatpush2.bf16.msra.mxu0 0
    %1363 = vmatprep.mubr.bf16.mxu0 0
    %1364 = vmatmul.mubr.bf16.gmra.mxu0 %v1326
    %v1365 = vpop.f32.mrf.mxu0
    %v1366 = vadd.f32 0.0, %v1365
    %v1367 = vpop.f32.mrf.mxu0
    %v1368 = vpop.f32.mrf.mxu0
    %v1369 = vpop.f32.mrf.mxu0
    %1370 = vdwg.mxu0
    %v1371 = vadd.f32 %v1215, %v1366
    %v1373 = vsel %vm903, %v761, 0
    %v1376 = vsel %vm903, %v828, 0
    %1378 = vmatprep.subr.bf16.mxu0 0
    %1379 = vmatpush1.bf16.xpose.msra.mxu0 0
    %1380 = vmatprep.subr.bf16.mxu0 0
    %1381 = vmatpush1.bf16.xpose.msra.mxu0 0
    %1382 = vmatprep.subr.bf16.mxu0 0
    %1383 = vmatpush1.bf16.xpose.msra.mxu0 0
    %1384 = vmatprep.subr.bf16.mxu0 0
    %1385 = vmatpush1.bf16.xpose.msra.mxu0 0
    %1386 = vmatprep.subr.bf16.mxu0 0
    %1387 = vmatpush1.bf16.xpose.msra.mxu0 0
    %1388 = vmatprep.subr.bf16.mxu0 0
    %1389 = vmatpush1.bf16.xpose.msra.mxu0 0
    %1390 = vmatprep.subr.bf16.mxu0 0
    %1391 = vmatpush1.bf16.xpose.msra.mxu0 0
    %1392 = vmatprep.subr.bf16.mxu0 0
    %1393 = vmatpush1.bf16.xpose.msra.mxu0 %v1376
    %1394 = vmatprep.subr.bf16.mxu0 0
    %1395 = vmatpush2.bf16.xpose.msra.mxu0 0
    %1396 = vmatprep.subr.bf16.mxu0 0
    %1397 = vmatpush2.bf16.xpose.msra.mxu0 0
    %1398 = vmatprep.subr.bf16.mxu0 0
    %1399 = vmatpush2.bf16.xpose.msra.mxu0 0
    %1400 = vmatprep.subr.bf16.mxu0 0
    %1401 = vmatpush2.bf16.xpose.msra.mxu0 0
    %1402 = vmatprep.subr.bf16.mxu0 0
    %1403 = vmatpush2.bf16.xpose.msra.mxu0 0
    %1404 = vmatprep.subr.bf16.mxu0 0
    %1405 = vmatpush2.bf16.xpose.msra.mxu0 0
    %1406 = vmatprep.subr.bf16.mxu0 0
    %1407 = vmatpush2.bf16.xpose.msra.mxu0 0
    %1408 = vmatprep.subr.bf16.mxu0 0
    %1409 = vmatpush2.bf16.xpose.msra.mxu0 0
    %1410 = vmatprep.mubr.bf16.mxu0 0
    %1411 = vmatmul.mubr.bf16.gmra.mxu0 %v1373
    %v1412 = vpop.f32.mrf.mxu0
    %v1413 = vadd.f32 0.0, %v1412
    %v1414 = vpop.f32.mrf.mxu0
    %v1415 = vpop.f32.mrf.mxu0
    %v1416 = vpop.f32.mrf.mxu0
    %1417 = vdwg.mxu0
    %v1418 = vmul.f32 %v1413, 0.35355338
    %v1419 = vsel %vm94, %v1418, -1e+30
    %v1420 = vsel %vm903, %v1419, -inf
    %1421 = vmax.xlane.f32.xlu0 %v1420
    %v1422 = vpop.xlane.xlu0 %1421
    %v1423 = vsub.f32 %v1419, %v1422
    %v1424 = vmul.f32 %v1423, 1.442695
    %v1425 = vpow.pop %v1424
    %v1426 = vsel %vm903, %v1425, 0.0
    %1427 = vadd.xlane.f32.xlu0 %v1426
    %v1428 = vpop.xlane.xlu0 %1427
    %v1429 = vpack.c.bf16 %v1425, %v1425
    %v1431 = vsel %vm903, %v1429, 0
    %v1434 = vsel %vm965, %v895, 0
    %1436 = vmatprep.subr.bf16.mxu0 0
    %1437 = vmatpush1.bf16.msra.mxu0 0
    %1438 = vmatprep.subr.bf16.mxu0 0
    %1439 = vmatpush1.bf16.msra.mxu0 0
    %1440 = vmatprep.subr.bf16.mxu0 0
    %1441 = vmatpush1.bf16.msra.mxu0 0
    %1442 = vmatprep.subr.bf16.mxu0 0
    %1443 = vmatpush1.bf16.msra.mxu0 0
    %1444 = vmatprep.subr.bf16.mxu0 0
    %1445 = vmatpush1.bf16.msra.mxu0 0
    %1446 = vmatprep.subr.bf16.mxu0 0
    %1447 = vmatpush1.bf16.msra.mxu0 0
    %1448 = vmatprep.subr.bf16.mxu0 0
    %1449 = vmatpush1.bf16.msra.mxu0 0
    %1450 = vmatprep.subr.bf16.mxu0 0
    %1451 = vmatpush1.bf16.msra.mxu0 %v1434
    %1452 = vmatprep.subr.bf16.mxu0 0
    %1453 = vmatpush2.bf16.msra.mxu0 0
    %1454 = vmatprep.subr.bf16.mxu0 0
    %1455 = vmatpush2.bf16.msra.mxu0 0
    %1456 = vmatprep.subr.bf16.mxu0 0
    %1457 = vmatpush2.bf16.msra.mxu0 0
    %1458 = vmatprep.subr.bf16.mxu0 0
    %1459 = vmatpush2.bf16.msra.mxu0 0
    %1460 = vmatprep.subr.bf16.mxu0 0
    %1461 = vmatpush2.bf16.msra.mxu0 0
    %1462 = vmatprep.subr.bf16.mxu0 0
    %1463 = vmatpush2.bf16.msra.mxu0 0
    %1464 = vmatprep.subr.bf16.mxu0 0
    %1465 = vmatpush2.bf16.msra.mxu0 0
    %1466 = vmatprep.subr.bf16.mxu0 0
    %1467 = vmatpush2.bf16.msra.mxu0 0
    %1468 = vmatprep.mubr.bf16.mxu0 0
    %1469 = vmatmul.mubr.bf16.gmra.mxu0 %v1431
    %v1470 = vpop.f32.mrf.mxu0
    %v1471 = vadd.f32 0.0, %v1470
    %v1472 = vpop.f32.mrf.mxu0
    %v1473 = vpop.f32.mrf.mxu0
    %v1474 = vpop.f32.mrf.mxu0
    %1475 = vdwg.mxu0
    %v1476 = vrcp.pop %v1428
    %v1477 = vmul.f32 %v1471, %v1476
    %v1478 = vpack.c.bf16 %v1477, %v1477
    %s1479 = scalar_lea.vmem %s9, 12
    %v1480 = vld [vmem:[%s1479] sm:$0xf]
    %v1482 = vsel %vm903, %v1478, 0
    %v1485 = vsel %vm965, %v1480, 0
    %1487 = vmatprep.subr.bf16.mxu0 0
    %1488 = vmatpush1.bf16.msra.mxu0 0
    %1489 = vmatprep.subr.bf16.mxu0 0
    %1490 = vmatpush1.bf16.msra.mxu0 0
    %1491 = vmatprep.subr.bf16.mxu0 0
    %1492 = vmatpush1.bf16.msra.mxu0 0
    %1493 = vmatprep.subr.bf16.mxu0 0
    %1494 = vmatpush1.bf16.msra.mxu0 0
    %1495 = vmatprep.subr.bf16.mxu0 0
    %1496 = vmatpush1.bf16.msra.mxu0 0
    %1497 = vmatprep.subr.bf16.mxu0 0
    %1498 = vmatpush1.bf16.msra.mxu0 0
    %1499 = vmatprep.subr.bf16.mxu0 0
    %1500 = vmatpush1.bf16.msra.mxu0 0
    %1501 = vmatprep.subr.bf16.mxu0 0
    %1502 = vmatpush1.bf16.msra.mxu0 %v1485
    %1503 = vmatprep.subr.bf16.mxu0 0
    %1504 = vmatpush2.bf16.msra.mxu0 0
    %1505 = vmatprep.subr.bf16.mxu0 0
    %1506 = vmatpush2.bf16.msra.mxu0 0
    %1507 = vmatprep.subr.bf16.mxu0 0
    %1508 = vmatpush2.bf16.msra.mxu0 0
    %1509 = vmatprep.subr.bf16.mxu0 0
    %1510 = vmatpush2.bf16.msra.mxu0 0
    %1511 = vmatprep.subr.bf16.mxu0 0
    %1512 = vmatpush2.bf16.msra.mxu0 0
    %1513 = vmatprep.subr.bf16.mxu0 0
    %1514 = vmatpush2.bf16.msra.mxu0 0
    %1515 = vmatprep.subr.bf16.mxu0 0
    %1516 = vmatpush2.bf16.msra.mxu0 0
    %1517 = vmatprep.subr.bf16.mxu0 0
    %1518 = vmatpush2.bf16.msra.mxu0 0
    %1519 = vmatprep.mubr.bf16.mxu0 0
    %1520 = vmatmul.mubr.bf16.gmra.mxu0 %v1482
    %v1521 = vpop.f32.mrf.mxu0
    %v1522 = vadd.f32 0.0, %v1521
    %v1523 = vpop.f32.mrf.mxu0
    %v1524 = vpop.f32.mrf.mxu0
    %v1525 = vpop.f32.mrf.mxu0
    %1526 = vdwg.mxu0
    %v1527 = vadd.f32 %v1371, %v1522
    %1528 = vst.msk [vmem:[#allocation2] sm:$0xff] %vm42, %v1527
    %v1529 = vadd.f32 %v41, %v900
    %v1531 = vrot.slane %v162, 4
    %v1533 = vrot.slane %v227, 4
    %v1535 = vsel %vm903, %v1531, 0
    %v1538 = vsel %vm903, %v1533, 0
    %1540 = vmatprep.subr.bf16.mxu0 0
    %1541 = vmatpush1.bf16.xpose.msra.mxu0 0
    %1542 = vmatprep.subr.bf16.mxu0 0
    %1543 = vmatpush1.bf16.xpose.msra.mxu0 0
    %1544 = vmatprep.subr.bf16.mxu0 0
    %1545 = vmatpush1.bf16.xpose.msra.mxu0 0
    %1546 = vmatprep.subr.bf16.mxu0 0
    %1547 = vmatpush1.bf16.xpose.msra.mxu0 0
    %1548 = vmatprep.subr.bf16.mxu0 0
    %1549 = vmatpush1.bf16.xpose.msra.mxu0 0
    %1550 = vmatprep.subr.bf16.mxu0 0
    %1551 = vmatpush1.bf16.xpose.msra.mxu0 0
    %1552 = vmatprep.subr.bf16.mxu0 0
    %1553 = vmatpush1.bf16.xpose.msra.mxu0 0
    %1554 = vmatprep.subr.bf16.mxu0 0
    %1555 = vmatpush1.bf16.xpose.msra.mxu0 %v1538
    %1556 = vmatprep.subr.bf16.mxu0 0
    %1557 = vmatpush2.bf16.xpose.msra.mxu0 0
    %1558 = vmatprep.subr.bf16.mxu0 0
    %1559 = vmatpush2.bf16.xpose.msra.mxu0 0
    %1560 = vmatprep.subr.bf16.mxu0 0
    %1561 = vmatpush2.bf16.xpose.msra.mxu0 0
    %1562 = vmatprep.subr.bf16.mxu0 0
    %1563 = vmatpush2.bf16.xpose.msra.mxu0 0
    %1564 = vmatprep.subr.bf16.mxu0 0
    %1565 = vmatpush2.bf16.xpose.msra.mxu0 0
    %1566 = vmatprep.subr.bf16.mxu0 0
    %1567 = vmatpush2.bf16.xpose.msra.mxu0 0
    %1568 = vmatprep.subr.bf16.mxu0 0
    %1569 = vmatpush2.bf16.xpose.msra.mxu0 0
    %1570 = vmatprep.subr.bf16.mxu0 0
    %1571 = vmatpush2.bf16.xpose.msra.mxu0 0
    %1572 = vmatprep.mubr.bf16.mxu0 0
    %1573 = vmatmul.mubr.bf16.gmra.mxu0 %v1535
    %v1574 = vpop.f32.mrf.mxu0
    %v1575 = vadd.f32 0.0, %v1574
    %v1576 = vpop.f32.mrf.mxu0
    %v1577 = vpop.f32.mrf.mxu0
    %v1578 = vpop.f32.mrf.mxu0
    %1579 = vdwg.mxu0
    %v1580 = vmul.f32 %v1575, 0.35355338
    %v1581 = vsel %vm94, %v1580, -1e+30
    %v1582 = vsel %vm903, %v1581, -inf
    %1583 = vmax.xlane.f32.xlu0 %v1582
    %v1584 = vpop.xlane.xlu0 %1583
    %v1585 = vsub.f32 %v1581, %v1584
    %v1586 = vmul.f32 %v1585, 1.442695
    %v1587 = vpow.pop %v1586
    %v1588 = vsel %vm903, %v1587, 0.0
    %1589 = vadd.xlane.f32.xlu0 %v1588
    %v1590 = vpop.xlane.xlu0 %1589
    %v1591 = vpack.c.bf16 %v1587, %v1587
    %v1593 = vrot.slane %v292, 4
    %v1595 = vsel %vm903, %v1591, 0
    %v1598 = vsel %vm965, %v1593, 0
    %1600 = vmatprep.subr.bf16.mxu0 0
    %1601 = vmatpush1.bf16.msra.mxu0 0
    %1602 = vmatprep.subr.bf16.mxu0 0
    %1603 = vmatpush1.bf16.msra.mxu0 0
    %1604 = vmatprep.subr.bf16.mxu0 0
    %1605 = vmatpush1.bf16.msra.mxu0 0
    %1606 = vmatprep.subr.bf16.mxu0 0
    %1607 = vmatpush1.bf16.msra.mxu0 0
    %1608 = vmatprep.subr.bf16.mxu0 0
    %1609 = vmatpush1.bf16.msra.mxu0 0
    %1610 = vmatprep.subr.bf16.mxu0 0
    %1611 = vmatpush1.bf16.msra.mxu0 0
    %1612 = vmatprep.subr.bf16.mxu0 0
    %1613 = vmatpush1.bf16.msra.mxu0 0
    %1614 = vmatprep.subr.bf16.mxu0 0
    %1615 = vmatpush1.bf16.msra.mxu0 %v1598
    %1616 = vmatprep.subr.bf16.mxu0 0
    %1617 = vmatpush2.bf16.msra.mxu0 0
    %1618 = vmatprep.subr.bf16.mxu0 0
    %1619 = vmatpush2.bf16.msra.mxu0 0
    %1620 = vmatprep.subr.bf16.mxu0 0
    %1621 = vmatpush2.bf16.msra.mxu0 0
    %1622 = vmatprep.subr.bf16.mxu0 0
    %1623 = vmatpush2.bf16.msra.mxu0 0
    %1624 = vmatprep.subr.bf16.mxu0 0
    %1625 = vmatpush2.bf16.msra.mxu0 0
    %1626 = vmatprep.subr.bf16.mxu0 0
    %1627 = vmatpush2.bf16.msra.mxu0 0
    %1628 = vmatprep.subr.bf16.mxu0 0
    %1629 = vmatpush2.bf16.msra.mxu0 0
    %1630 = vmatprep.subr.bf16.mxu0 0
    %1631 = vmatpush2.bf16.msra.mxu0 0
    %1632 = vmatprep.mubr.bf16.mxu0 0
    %1633 = vmatmul.mubr.bf16.gmra.mxu0 %v1595
    %v1634 = vpop.f32.mrf.mxu0
    %v1635 = vadd.f32 0.0, %v1634
    %v1636 = vpop.f32.mrf.mxu0
    %v1637 = vpop.f32.mrf.mxu0
    %v1638 = vpop.f32.mrf.mxu0
    %1639 = vdwg.mxu0
    %v1640 = vrcp.pop %v1590
    %v1641 = vmul.f32 %v1635, %v1640
    %v1642 = vpack.c.bf16 %v1641, %v1641
    %v1643 = vld [vmem:[%s9] sm:$0xf]
    %v1645 = vsel %vm903, %v1642, 0
    %v1648 = vsel %vm965, %v1643, 0
    %1650 = vmatprep.subr.bf16.mxu0 0
    %1651 = vmatpush1.bf16.msra.mxu0 0
    %1652 = vmatprep.subr.bf16.mxu0 0
    %1653 = vmatpush1.bf16.msra.mxu0 0
    %1654 = vmatprep.subr.bf16.mxu0 0
    %1655 = vmatpush1.bf16.msra.mxu0 0
    %1656 = vmatprep.subr.bf16.mxu0 0
    %1657 = vmatpush1.bf16.msra.mxu0 0
    %1658 = vmatprep.subr.bf16.mxu0 0
    %1659 = vmatpush1.bf16.msra.mxu0 0
    %1660 = vmatprep.subr.bf16.mxu0 0
    %1661 = vmatpush1.bf16.msra.mxu0 0
    %1662 = vmatprep.subr.bf16.mxu0 0
    %1663 = vmatpush1.bf16.msra.mxu0 0
    %1664 = vmatprep.subr.bf16.mxu0 0
    %1665 = vmatpush1.bf16.msra.mxu0 %v1648
    %1666 = vmatprep.subr.bf16.mxu0 0
    %1667 = vmatpush2.bf16.msra.mxu0 0
    %1668 = vmatprep.subr.bf16.mxu0 0
    %1669 = vmatpush2.bf16.msra.mxu0 0
    %1670 = vmatprep.subr.bf16.mxu0 0
    %1671 = vmatpush2.bf16.msra.mxu0 0
    %1672 = vmatprep.subr.bf16.mxu0 0
    %1673 = vmatpush2.bf16.msra.mxu0 0
    %1674 = vmatprep.subr.bf16.mxu0 0
    %1675 = vmatpush2.bf16.msra.mxu0 0
    %1676 = vmatprep.subr.bf16.mxu0 0
    %1677 = vmatpush2.bf16.msra.mxu0 0
    %1678 = vmatprep.subr.bf16.mxu0 0
    %1679 = vmatpush2.bf16.msra.mxu0 0
    %1680 = vmatprep.subr.bf16.mxu0 0
    %1681 = vmatpush2.bf16.msra.mxu0 0
    %1682 = vmatprep.mubr.bf16.mxu0 0
    %1683 = vmatmul.mubr.bf16.gmra.mxu0 %v1645
    %v1684 = vpop.f32.mrf.mxu0
    %v1685 = vadd.f32 0.0, %v1684
    %v1686 = vpop.f32.mrf.mxu0
    %v1687 = vpop.f32.mrf.mxu0
    %v1688 = vpop.f32.mrf.mxu0
    %1689 = vdwg.mxu0
    %v1690 = vadd.f32 %v1529, %v1685
    %v1692 = vrot.slane %v359, 4
    %v1694 = vrot.slane %v426, 4
    %v1696 = vsel %vm903, %v1692, 0
    %v1699 = vsel %vm903, %v1694, 0
    %1701 = vmatprep.subr.bf16.mxu0 0
    %1702 = vmatpush1.bf16.xpose.msra.mxu0 0
    %1703 = vmatprep.subr.bf16.mxu0 0
    %1704 = vmatpush1.bf16.xpose.msra.mxu0 0
    %1705 = vmatprep.subr.bf16.mxu0 0
    %1706 = vmatpush1.bf16.xpose.msra.mxu0 0
    %1707 = vmatprep.subr.bf16.mxu0 0
    %1708 = vmatpush1.bf16.xpose.msra.mxu0 0
    %1709 = vmatprep.subr.bf16.mxu0 0
    %1710 = vmatpush1.bf16.xpose.msra.mxu0 0
    %1711 = vmatprep.subr.bf16.mxu0 0
    %1712 = vmatpush1.bf16.xpose.msra.mxu0 0
    %1713 = vmatprep.subr.bf16.mxu0 0
    %1714 = vmatpush1.bf16.xpose.msra.mxu0 0
    %1715 = vmatprep.subr.bf16.mxu0 0
    %1716 = vmatpush1.bf16.xpose.msra.mxu0 %v1699
    %1717 = vmatprep.subr.bf16.mxu0 0
    %1718 = vmatpush2.bf16.xpose.msra.mxu0 0
    %1719 = vmatprep.subr.bf16.mxu0 0
    %1720 = vmatpush2.bf16.xpose.msra.mxu0 0
    %1721 = vmatprep.subr.bf16.mxu0 0
    %1722 = vmatpush2.bf16.xpose.msra.mxu0 0
    %1723 = vmatprep.subr.bf16.mxu0 0
    %1724 = vmatpush2.bf16.xpose.msra.mxu0 0
    %1725 = vmatprep.subr.bf16.mxu0 0
    %1726 = vmatpush2.bf16.xpose.msra.mxu0 0
    %1727 = vmatprep.subr.bf16.mxu0 0
    %1728 = vmatpush2.bf16.xpose.msra.mxu0 0
    %1729 = vmatprep.subr.bf16.mxu0 0
    %1730 = vmatpush2.bf16.xpose.msra.mxu0 0
    %1731 = vmatprep.subr.bf16.mxu0 0
    %1732 = vmatpush2.bf16.xpose.msra.mxu0 0
    %1733 = vmatprep.mubr.bf16.mxu0 0
    %1734 = vmatmul.mubr.bf16.gmra.mxu0 %v1696
    %v1735 = vpop.f32.mrf.mxu0
    %v1736 = vadd.f32 0.0, %v1735
    %v1737 = vpop.f32.mrf.mxu0
    %v1738 = vpop.f32.mrf.mxu0
    %v1739 = vpop.f32.mrf.mxu0
    %1740 = vdwg.mxu0
    %v1741 = vmul.f32 %v1736, 0.35355338
    %v1742 = vsel %vm94, %v1741, -1e+30
    %v1743 = vsel %vm903, %v1742, -inf
    %1744 = vmax.xlane.f32.xlu0 %v1743
    %v1745 = vpop.xlane.xlu0 %1744
    %v1746 = vsub.f32 %v1742, %v1745
    %v1747 = vmul.f32 %v1746, 1.442695
    %v1748 = vpow.pop %v1747
    %v1749 = vsel %vm903, %v1748, 0.0
    %1750 = vadd.xlane.f32.xlu0 %v1749
    %v1751 = vpop.xlane.xlu0 %1750
    %v1752 = vpack.c.bf16 %v1748, %v1748
    %v1754 = vrot.slane %v493, 4
    %v1756 = vsel %vm903, %v1752, 0
    %v1759 = vsel %vm965, %v1754, 0
    %1761 = vmatprep.subr.bf16.mxu0 0
    %1762 = vmatpush1.bf16.msra.mxu0 0
    %1763 = vmatprep.subr.bf16.mxu0 0
    %1764 = vmatpush1.bf16.msra.mxu0 0
    %1765 = vmatprep.subr.bf16.mxu0 0
    %1766 = vmatpush1.bf16.msra.mxu0 0
    %1767 = vmatprep.subr.bf16.mxu0 0
    %1768 = vmatpush1.bf16.msra.mxu0 0
    %1769 = vmatprep.subr.bf16.mxu0 0
    %1770 = vmatpush1.bf16.msra.mxu0 0
    %1771 = vmatprep.subr.bf16.mxu0 0
    %1772 = vmatpush1.bf16.msra.mxu0 0
    %1773 = vmatprep.subr.bf16.mxu0 0
    %1774 = vmatpush1.bf16.msra.mxu0 0
    %1775 = vmatprep.subr.bf16.mxu0 0
    %1776 = vmatpush1.bf16.msra.mxu0 %v1759
    %1777 = vmatprep.subr.bf16.mxu0 0
    %1778 = vmatpush2.bf16.msra.mxu0 0
    %1779 = vmatprep.subr.bf16.mxu0 0
    %1780 = vmatpush2.bf16.msra.mxu0 0
    %1781 = vmatprep.subr.bf16.mxu0 0
    %1782 = vmatpush2.bf16.msra.mxu0 0
    %1783 = vmatprep.subr.bf16.mxu0 0
    %1784 = vmatpush2.bf16.msra.mxu0 0
    %1785 = vmatprep.subr.bf16.mxu0 0
    %1786 = vmatpush2.bf16.msra.mxu0 0
    %1787 = vmatprep.subr.bf16.mxu0 0
    %1788 = vmatpush2.bf16.msra.mxu0 0
    %1789 = vmatprep.subr.bf16.mxu0 0
    %1790 = vmatpush2.bf16.msra.mxu0 0
    %1791 = vmatprep.subr.bf16.mxu0 0
    %1792 = vmatpush2.bf16.msra.mxu0 0
    %1793 = vmatprep.mubr.bf16.mxu0 0
    %1794 = vmatmul.mubr.bf16.gmra.mxu0 %v1756
    %v1795 = vpop.f32.mrf.mxu0
    %v1796 = vadd.f32 0.0, %v1795
    %v1797 = vpop.f32.mrf.mxu0
    %v1798 = vpop.f32.mrf.mxu0
    %v1799 = vpop.f32.mrf.mxu0
    %1800 = vdwg.mxu0
    %v1801 = vrcp.pop %v1751
    %v1802 = vmul.f32 %v1796, %v1801
    %v1803 = vpack.c.bf16 %v1802, %v1802
    %v1804 = vld [vmem:[%s1167] sm:$0xf]
    %v1806 = vsel %vm903, %v1803, 0
    %v1809 = vsel %vm965, %v1804, 0
    %1811 = vmatprep.subr.bf16.mxu0 0
    %1812 = vmatpush1.bf16.msra.mxu0 0
    %1813 = vmatprep.subr.bf16.mxu0 0
    %1814 = vmatpush1.bf16.msra.mxu0 0
    %1815 = vmatprep.subr.bf16.mxu0 0
    %1816 = vmatpush1.bf16.msra.mxu0 0
    %1817 = vmatprep.subr.bf16.mxu0 0
    %1818 = vmatpush1.bf16.msra.mxu0 0
    %1819 = vmatprep.subr.bf16.mxu0 0
    %1820 = vmatpush1.bf16.msra.mxu0 0
    %1821 = vmatprep.subr.bf16.mxu0 0
    %1822 = vmatpush1.bf16.msra.mxu0 0
    %1823 = vmatprep.subr.bf16.mxu0 0
    %1824 = vmatpush1.bf16.msra.mxu0 0
    %1825 = vmatprep.subr.bf16.mxu0 0
    %1826 = vmatpush1.bf16.msra.mxu0 %v1809
    %1827 = vmatprep.subr.bf16.mxu0 0
    %1828 = vmatpush2.bf16.msra.mxu0 0
    %1829 = vmatprep.subr.bf16.mxu0 0
    %1830 = vmatpush2.bf16.msra.mxu0 0
    %1831 = vmatprep.subr.bf16.mxu0 0
    %1832 = vmatpush2.bf16.msra.mxu0 0
    %1833 = vmatprep.subr.bf16.mxu0 0
    %1834 = vmatpush2.bf16.msra.mxu0 0
    %1835 = vmatprep.subr.bf16.mxu0 0
    %1836 = vmatpush2.bf16.msra.mxu0 0
    %1837 = vmatprep.subr.bf16.mxu0 0
    %1838 = vmatpush2.bf16.msra.mxu0 0
    %1839 = vmatprep.subr.bf16.mxu0 0
    %1840 = vmatpush2.bf16.msra.mxu0 0
    %1841 = vmatprep.subr.bf16.mxu0 0
    %1842 = vmatpush2.bf16.msra.mxu0 0
    %1843 = vmatprep.mubr.bf16.mxu0 0
    %1844 = vmatmul.mubr.bf16.gmra.mxu0 %v1806
    %v1845 = vpop.f32.mrf.mxu0
    %v1846 = vadd.f32 0.0, %v1845
    %v1847 = vpop.f32.mrf.mxu0
    %v1848 = vpop.f32.mrf.mxu0
    %v1849 = vpop.f32.mrf.mxu0
    %1850 = vdwg.mxu0
    %v1851 = vadd.f32 %v1690, %v1846
    %v1853 = vrot.slane %v560, 4
    %v1855 = vrot.slane %v627, 4
    %v1857 = vsel %vm903, %v1853, 0
    %v1860 = vsel %vm903, %v1855, 0
    %1862 = vmatprep.subr.bf16.mxu0 0
    %1863 = vmatpush1.bf16.xpose.msra.mxu0 0
    %1864 = vmatprep.subr.bf16.mxu0 0
    %1865 = vmatpush1.bf16.xpose.msra.mxu0 0
    %1866 = vmatprep.subr.bf16.mxu0 0
    %1867 = vmatpush1.bf16.xpose.msra.mxu0 0
    %1868 = vmatprep.subr.bf16.mxu0 0
    %1869 = vmatpush1.bf16.xpose.msra.mxu0 0
    %1870 = vmatprep.subr.bf16.mxu0 0
    %1871 = vmatpush1.bf16.xpose.msra.mxu0 0
    %1872 = vmatprep.subr.bf16.mxu0 0
    %1873 = vmatpush1.bf16.xpose.msra.mxu0 0
    %1874 = vmatprep.subr.bf16.mxu0 0
    %1875 = vmatpush1.bf16.xpose.msra.mxu0 0
    %1876 = vmatprep.subr.bf16.mxu0 0
    %1877 = vmatpush1.bf16.xpose.msra.mxu0 %v1860
    %1878 = vmatprep.subr.bf16.mxu0 0
    %1879 = vmatpush2.bf16.xpose.msra.mxu0 0
    %1880 = vmatprep.subr.bf16.mxu0 0
    %1881 = vmatpush2.bf16.xpose.msra.mxu0 0
    %1882 = vmatprep.subr.bf16.mxu0 0
    %1883 = vmatpush2.bf16.xpose.msra.mxu0 0
    %1884 = vmatprep.subr.bf16.mxu0 0
    %1885 = vmatpush2.bf16.xpose.msra.mxu0 0
    %1886 = vmatprep.subr.bf16.mxu0 0
    %1887 = vmatpush2.bf16.xpose.msra.mxu0 0
    %1888 = vmatprep.subr.bf16.mxu0 0
    %1889 = vmatpush2.bf16.xpose.msra.mxu0 0
    %1890 = vmatprep.subr.bf16.mxu0 0
    %1891 = vmatpush2.bf16.xpose.msra.mxu0 0
    %1892 = vmatprep.subr.bf16.mxu0 0
    %1893 = vmatpush2.bf16.xpose.msra.mxu0 0
    %1894 = vmatprep.mubr.bf16.mxu0 0
    %1895 = vmatmul.mubr.bf16.gmra.mxu0 %v1857
    %v1896 = vpop.f32.mrf.mxu0
    %v1897 = vadd.f32 0.0, %v1896
    %v1898 = vpop.f32.mrf.mxu0
    %v1899 = vpop.f32.mrf.mxu0
    %v1900 = vpop.f32.mrf.mxu0
    %1901 = vdwg.mxu0
    %v1902 = vmul.f32 %v1897, 0.35355338
    %v1903 = vsel %vm94, %v1902, -1e+30
    %v1904 = vsel %vm903, %v1903, -inf
    %1905 = vmax.xlane.f32.xlu0 %v1904
    %v1906 = vpop.xlane.xlu0 %1905
    %v1907 = vsub.f32 %v1903, %v1906
    %v1908 = vmul.f32 %v1907, 1.442695
    %v1909 = vpow.pop %v1908
    %v1910 = vsel %vm903, %v1909, 0.0
    %1911 = vadd.xlane.f32.xlu0 %v1910
    %v1912 = vpop.xlane.xlu0 %1911
    %v1913 = vpack.c.bf16 %v1909, %v1909
    %v1915 = vrot.slane %v694, 4
    %v1917 = vsel %vm903, %v1913, 0
    %v1920 = vsel %vm965, %v1915, 0
    %1922 = vmatprep.subr.bf16.mxu0 0
    %1923 = vmatpush1.bf16.msra.mxu0 0
    %1924 = vmatprep.subr.bf16.mxu0 0
    %1925 = vmatpush1.bf16.msra.mxu0 0
    %1926 = vmatprep.subr.bf16.mxu0 0
    %1927 = vmatpush1.bf16.msra.mxu0 0
    %1928 = vmatprep.subr.bf16.mxu0 0
    %1929 = vmatpush1.bf16.msra.mxu0 0
    %1930 = vmatprep.subr.bf16.mxu0 0
    %1931 = vmatpush1.bf16.msra.mxu0 0
    %1932 = vmatprep.subr.bf16.mxu0 0
    %1933 = vmatpush1.bf16.msra.mxu0 0
    %1934 = vmatprep.subr.bf16.mxu0 0
    %1935 = vmatpush1.bf16.msra.mxu0 0
    %1936 = vmatprep.subr.bf16.mxu0 0
    %1937 = vmatpush1.bf16.msra.mxu0 %v1920
    %1938 = vmatprep.subr.bf16.mxu0 0
    %1939 = vmatpush2.bf16.msra.mxu0 0
    %1940 = vmatprep.subr.bf16.mxu0 0
    %1941 = vmatpush2.bf16.msra.mxu0 0
    %1942 = vmatprep.subr.bf16.mxu0 0
    %1943 = vmatpush2.bf16.msra.mxu0 0
    %1944 = vmatprep.subr.bf16.mxu0 0
    %1945 = vmatpush2.bf16.msra.mxu0 0
    %1946 = vmatprep.subr.bf16.mxu0 0
    %1947 = vmatpush2.bf16.msra.mxu0 0
    %1948 = vmatprep.subr.bf16.mxu0 0
    %1949 = vmatpush2.bf16.msra.mxu0 0
    %1950 = vmatprep.subr.bf16.mxu0 0
    %1951 = vmatpush2.bf16.msra.mxu0 0
    %1952 = vmatprep.subr.bf16.mxu0 0
    %1953 = vmatpush2.bf16.msra.mxu0 0
    %1954 = vmatprep.mubr.bf16.mxu0 0
    %1955 = vmatmul.mubr.bf16.gmra.mxu0 %v1917
    %v1956 = vpop.f32.mrf.mxu0
    %v1957 = vadd.f32 0.0, %v1956
    %v1958 = vpop.f32.mrf.mxu0
    %v1959 = vpop.f32.mrf.mxu0
    %v1960 = vpop.f32.mrf.mxu0
    %1961 = vdwg.mxu0
    %v1962 = vrcp.pop %v1912
    %v1963 = vmul.f32 %v1957, %v1962
    %v1964 = vpack.c.bf16 %v1963, %v1963
    %v1965 = vld [vmem:[%s1323] sm:$0xf]
    %v1967 = vsel %vm903, %v1964, 0
    %v1970 = vsel %vm965, %v1965, 0
    %1972 = vmatprep.subr.bf16.mxu0 0
    %1973 = vmatpush1.bf16.msra.mxu0 0
    %1974 = vmatprep.subr.bf16.mxu0 0
    %1975 = vmatpush1.bf16.msra.mxu0 0
    %1976 = vmatprep.subr.bf16.mxu0 0
    %1977 = vmatpush1.bf16.msra.mxu0 0
    %1978 = vmatprep.subr.bf16.mxu0 0
    %1979 = vmatpush1.bf16.msra.mxu0 0
    %1980 = vmatprep.subr.bf16.mxu0 0
    %1981 = vmatpush1.bf16.msra.mxu0 0
    %1982 = vmatprep.subr.bf16.mxu0 0
    %1983 = vmatpush1.bf16.msra.mxu0 0
    %1984 = vmatprep.subr.bf16.mxu0 0
    %1985 = vmatpush1.bf16.msra.mxu0 0
    %1986 = vmatprep.subr.bf16.mxu0 0
    %1987 = vmatpush1.bf16.msra.mxu0 %v1970
    %1988 = vmatprep.subr.bf16.mxu0 0
    %1989 = vmatpush2.bf16.msra.mxu0 0
    %1990 = vmatprep.subr.bf16.mxu0 0
    %1991 = vmatpush2.bf16.msra.mxu0 0
    %1992 = vmatprep.subr.bf16.mxu0 0
    %1993 = vmatpush2.bf16.msra.mxu0 0
    %1994 = vmatprep.subr.bf16.mxu0 0
    %1995 = vmatpush2.bf16.msra.mxu0 0
    %1996 = vmatprep.subr.bf16.mxu0 0
    %1997 = vmatpush2.bf16.msra.mxu0 0
    %1998 = vmatprep.subr.bf16.mxu0 0
    %1999 = vmatpush2.bf16.msra.mxu0 0
    %2000 = vmatprep.subr.bf16.mxu0 0
    %2001 = vmatpush2.bf16.msra.mxu0 0
    %2002 = vmatprep.subr.bf16.mxu0 0
    %2003 = vmatpush2.bf16.msra.mxu0 0
    %2004 = vmatprep.mubr.bf16.mxu0 0
    %2005 = vmatmul.mubr.bf16.gmra.mxu0 %v1967
    %v2006 = vpop.f32.mrf.mxu0
    %v2007 = vadd.f32 0.0, %v2006
    %v2008 = vpop.f32.mrf.mxu0
    %v2009 = vpop.f32.mrf.mxu0
    %v2010 = vpop.f32.mrf.mxu0
    %2011 = vdwg.mxu0
    %v2012 = vadd.f32 %v1851, %v2007
    %v2014 = vrot.slane %v761, 4
    %v2016 = vrot.slane %v828, 4
    %v2018 = vsel %vm903, %v2014, 0
    %v2021 = vsel %vm903, %v2016, 0
    %2023 = vmatprep.subr.bf16.mxu0 0
    %2024 = vmatpush1.bf16.xpose.msra.mxu0 0
    %2025 = vmatprep.subr.bf16.mxu0 0
    %2026 = vmatpush1.bf16.xpose.msra.mxu0 0
    %2027 = vmatprep.subr.bf16.mxu0 0
    %2028 = vmatpush1.bf16.xpose.msra.mxu0 0
    %2029 = vmatprep.subr.bf16.mxu0 0
    %2030 = vmatpush1.bf16.xpose.msra.mxu0 0
    %2031 = vmatprep.subr.bf16.mxu0 0
    %2032 = vmatpush1.bf16.xpose.msra.mxu0 0
    %2033 = vmatprep.subr.bf16.mxu0 0
    %2034 = vmatpush1.bf16.xpose.msra.mxu0 0
    %2035 = vmatprep.subr.bf16.mxu0 0
    %2036 = vmatpush1.bf16.xpose.msra.mxu0 0
    %2037 = vmatprep.subr.bf16.mxu0 0
    %2038 = vmatpush1.bf16.xpose.msra.mxu0 %v2021
    %2039 = vmatprep.subr.bf16.mxu0 0
    %2040 = vmatpush2.bf16.xpose.msra.mxu0 0
    %2041 = vmatprep.subr.bf16.mxu0 0
    %2042 = vmatpush2.bf16.xpose.msra.mxu0 0
    %2043 = vmatprep.subr.bf16.mxu0 0
    %2044 = vmatpush2.bf16.xpose.msra.mxu0 0
    %2045 = vmatprep.subr.bf16.mxu0 0
    %2046 = vmatpush2.bf16.xpose.msra.mxu0 0
    %2047 = vmatprep.subr.bf16.mxu0 0
    %2048 = vmatpush2.bf16.xpose.msra.mxu0 0
    %2049 = vmatprep.subr.bf16.mxu0 0
    %2050 = vmatpush2.bf16.xpose.msra.mxu0 0
    %2051 = vmatprep.subr.bf16.mxu0 0
    %2052 = vmatpush2.bf16.xpose.msra.mxu0 0
    %2053 = vmatprep.subr.bf16.mxu0 0
    %2054 = vmatpush2.bf16.xpose.msra.mxu0 0
    %2055 = vmatprep.mubr.bf16.mxu0 0
    %2056 = vmatmul.mubr.bf16.gmra.mxu0 %v2018
    %v2057 = vpop.f32.mrf.mxu0
    %v2058 = vadd.f32 0.0, %v2057
    %v2059 = vpop.f32.mrf.mxu0
    %v2060 = vpop.f32.mrf.mxu0
    %v2061 = vpop.f32.mrf.mxu0
    %2062 = vdwg.mxu0
    %v2063 = vmul.f32 %v2058, 0.35355338
    %v2064 = vsel %vm94, %v2063, -1e+30
    %v2065 = vsel %vm903, %v2064, -inf
    %2066 = vmax.xlane.f32.xlu0 %v2065
    %v2067 = vpop.xlane.xlu0 %2066
    %v2068 = vsub.f32 %v2064, %v2067
    %v2069 = vmul.f32 %v2068, 1.442695
    %v2070 = vpow.pop %v2069
    %v2071 = vsel %vm903, %v2070, 0.0
    %2072 = vadd.xlane.f32.xlu0 %v2071
    %v2073 = vpop.xlane.xlu0 %2072
    %v2074 = vpack.c.bf16 %v2070, %v2070
    %v2076 = vrot.slane %v895, 4
    %v2078 = vsel %vm903, %v2074, 0
    %v2081 = vsel %vm965, %v2076, 0
    %2083 = vmatprep.subr.bf16.mxu0 0
    %2084 = vmatpush1.bf16.msra.mxu0 0
    %2085 = vmatprep.subr.bf16.mxu0 0
    %2086 = vmatpush1.bf16.msra.mxu0 0
    %2087 = vmatprep.subr.bf16.mxu0 0
    %2088 = vmatpush1.bf16.msra.mxu0 0
    %2089 = vmatprep.subr.bf16.mxu0 0
    %2090 = vmatpush1.bf16.msra.mxu0 0
    %2091 = vmatprep.subr.bf16.mxu0 0
    %2092 = vmatpush1.bf16.msra.mxu0 0
    %2093 = vmatprep.subr.bf16.mxu0 0
    %2094 = vmatpush1.bf16.msra.mxu0 0
    %2095 = vmatprep.subr.bf16.mxu0 0
    %2096 = vmatpush1.bf16.msra.mxu0 0
    %2097 = vmatprep.subr.bf16.mxu0 0
    %2098 = vmatpush1.bf16.msra.mxu0 %v2081
    %2099 = vmatprep.subr.bf16.mxu0 0
    %2100 = vmatpush2.bf16.msra.mxu0 0
    %2101 = vmatprep.subr.bf16.mxu0 0
    %2102 = vmatpush2.bf16.msra.mxu0 0
    %2103 = vmatprep.subr.bf16.mxu0 0
    %2104 = vmatpush2.bf16.msra.mxu0 0
    %2105 = vmatprep.subr.bf16.mxu0 0
    %2106 = vmatpush2.bf16.msra.mxu0 0
    %2107 = vmatprep.subr.bf16.mxu0 0
    %2108 = vmatpush2.bf16.msra.mxu0 0
    %2109 = vmatprep.subr.bf16.mxu0 0
    %2110 = vmatpush2.bf16.msra.mxu0 0
    %2111 = vmatprep.subr.bf16.mxu0 0
    %2112 = vmatpush2.bf16.msra.mxu0 0
    %2113 = vmatprep.subr.bf16.mxu0 0
    %2114 = vmatpush2.bf16.msra.mxu0 0
    %2115 = vmatprep.mubr.bf16.mxu0 0
    %2116 = vmatmul.mubr.bf16.gmra.mxu0 %v2078
    %v2117 = vpop.f32.mrf.mxu0
    %v2118 = vadd.f32 0.0, %v2117
    %v2119 = vpop.f32.mrf.mxu0
    %v2120 = vpop.f32.mrf.mxu0
    %v2121 = vpop.f32.mrf.mxu0
    %2122 = vdwg.mxu0
    %v2123 = vrcp.pop %v2073
    %v2124 = vmul.f32 %v2118, %v2123
    %v2125 = vpack.c.bf16 %v2124, %v2124
    %v2126 = vld [vmem:[%s1479] sm:$0xf]
    %v2128 = vsel %vm903, %v2125, 0
    %v2131 = vsel %vm965, %v2126, 0
    %2133 = vmatprep.subr.bf16.mxu0 0
    %2134 = vmatpush1.bf16.msra.mxu0 0
    %2135 = vmatprep.subr.bf16.mxu0 0
    %2136 = vmatpush1.bf16.msra.mxu0 0
    %2137 = vmatprep.subr.bf16.mxu0 0
    %2138 = vmatpush1.bf16.msra.mxu0 0
    %2139 = vmatprep.subr.bf16.mxu0 0
    %2140 = vmatpush1.bf16.msra.mxu0 0
    %2141 = vmatprep.subr.bf16.mxu0 0
    %2142 = vmatpush1.bf16.msra.mxu0 0
    %2143 = vmatprep.subr.bf16.mxu0 0
    %2144 = vmatpush1.bf16.msra.mxu0 0
    %2145 = vmatprep.subr.bf16.mxu0 0
    %2146 = vmatpush1.bf16.msra.mxu0 0
    %2147 = vmatprep.subr.bf16.mxu0 0
    %2148 = vmatpush1.bf16.msra.mxu0 %v2131
    %2149 = vmatprep.subr.bf16.mxu0 0
    %2150 = vmatpush2.bf16.msra.mxu0 0
    %2151 = vmatprep.subr.bf16.mxu0 0
    %2152 = vmatpush2.bf16.msra.mxu0 0
    %2153 = vmatprep.subr.bf16.mxu0 0
    %2154 = vmatpush2.bf16.msra.mxu0 0
    %2155 = vmatprep.subr.bf16.mxu0 0
    %2156 = vmatpush2.bf16.msra.mxu0 0
    %2157 = vmatprep.subr.bf16.mxu0 0
    %2158 = vmatpush2.bf16.msra.mxu0 0
    %2159 = vmatprep.subr.bf16.mxu0 0
    %2160 = vmatpush2.bf16.msra.mxu0 0
    %2161 = vmatprep.subr.bf16.mxu0 0
    %2162 = vmatpush2.bf16.msra.mxu0 0
    %2163 = vmatprep.subr.bf16.mxu0 0
    %2164 = vmatpush2.bf16.msra.mxu0 0
    %2165 = vmatprep.mubr.bf16.mxu0 0
    %2166 = vmatmul.mubr.bf16.gmra.mxu0 %v2128
    %v2167 = vpop.f32.mrf.mxu0
    %v2168 = vadd.f32 0.0, %v2167
    %v2169 = vpop.f32.mrf.mxu0
    %v2170 = vpop.f32.mrf.mxu0
    %v2171 = vpop.f32.mrf.mxu0
    %2172 = vdwg.mxu0
    %v2173 = vadd.f32 %v2012, %v2168
    %2174 = vst.msk [vmem:[#allocation2 + $0x8] sm:$0xff] %vm42, %v2173
    // Predicated region
    $region46: #{tpu_custom_call.1} parent=1 // pred_check
      _
    $region47: #{tpu_custom_call.1} parent=1 // pred_check_branch
      %2176 = sbr.rel (0) target = $region49
    $region48: #{tpu_custom_call.1} parent=1 // pred_region
      %s2178 = ssub.s32 256, 256
      %2179 = vsyncadd [#allocation3], %s2178
      %s2180 = sshll.u32 [#allocation2], 4
      %s2181 = int_to_ptr.vmem [resolvable:$true] %s2180
      %2186 = dma.vmem_to_hbm [thread:$0]  %s2181, 256, %s11, [#allocation3], 128, 128, 8
    $region49: #{tpu_custom_call.1} parent=1 // pred_fallthru
      _
    // Predicated region
    $region50: #{tpu_custom_call.1} parent=1 // pred_check
      _
    $region51: #{tpu_custom_call.1} parent=1 // pred_check_branch
      %2188 = sbr.rel (0) target = $region53
    $region52: #{tpu_custom_call.1} parent=1 // pred_region
      %2189 = dma.done [#allocation3], 256
    $region53: #{tpu_custom_call.1} parent=1 // pred_fallthru
      _
    %2190 = vsyncpa [#allocation3], 1

</llo_original>
